<compile_context>
chip_gen: v6e
topology: v6e:2x2x1
jax: 0.10.0
libtpu: 0.0.40
codegen_flags: <defaults>
</compile_context>

<pallas_src>
import functools

import jax
import jax.numpy as jnp
from jax.experimental import pallas as pl
from jax.experimental.pallas import tpu as pltpu


# ---------------------------------------------------------------------------
# Fused kernel: adaptive-avg-pool (1,1,Nele) + flatten + ComplexConv1d(k,pad)
# ---------------------------------------------------------------------------
def _fused_kernel(xr_ref, xi_ref, w_ref, b_ref, out_ref, *,
                  cpad, k_taps, nele, kw, dh, width):
    # xr_ref, xi_ref : (Cin, D*H, W)      one batch element (real / imag part)
    # w_ref          : (K, 2*Cpad, Cin)   rows [0:Cpad]=wr (zero padded), [Cpad:]=wi
    # b_ref          : (2*Cpad, 1)        rows [0:Cpad]=br-bi, [Cpad:]=br+bi
    # out_ref        : (2*Cpad, Nele)     rows [0:Cpad]=real out, [Cpad:]=imag out
    inv = 1.0 / float(dh * kw)

    # ---- pool stage 1: reduce depth*height on the VPU ------------------------
    s_r = jnp.sum(xr_ref[...], axis=1)          # (Cin, W)
    s_i = jnp.sum(xi_ref[...], axis=1)          # (Cin, W)

    # iota grids for the in-register pooling / shift matrices
    row = jax.lax.broadcasted_iota(jnp.int32, (width, nele), 0)   # source w
    col = jax.lax.broadcasted_iota(jnp.int32, (width, nele), 1)   # output position

    y_r = jnp.zeros((2 * cpad, nele), jnp.float32)
    y_i = jnp.zeros((2 * cpad, nele), jnp.float32)

    half = (k_taps - 1) // 2
    for k in range(k_taps):                     # K = 3, unrolled
        o = k - half                            # conv tap offset (-1, 0, +1)
        # P_k[w, l] = inv  iff  w is inside the pooling window of output l+o
        # (out-of-range l+o automatically yields an all-zero column -> zero pad)
        sel = (row >= (col + o) * kw) & (row < (col + o + 1) * kw)
        p_k = jnp.where(sel, inv, 0.0)          # (W, Nele) f32, lives in vregs

        g_r = jnp.dot(s_r, p_k, preferred_element_type=jnp.float32)   # (Cin, Nele)
        g_i = jnp.dot(s_i, p_k, preferred_element_type=jnp.float32)

        wk = w_ref[k]                           # (2*Cpad, Cin): [wr_k ; wi_k]
        y_r = y_r + jnp.dot(wk, g_r, preferred_element_type=jnp.float32)
        y_i = y_i + jnp.dot(wk, g_i, preferred_element_type=jnp.float32)

    # y_r[:Cpad]=conv_r(xr), y_r[Cpad:]=conv_i(xr), y_i[:Cpad]=conv_r(xi), ...
    bias = b_ref[...]                           # (2*Cpad, 1)
    out_real = y_r[:cpad] - y_i[cpad:] + bias[:cpad]      # conv_r(xr)-conv_i(xi)+br-bi
    out_imag = y_i[:cpad] + y_r[cpad:] + bias[cpad:]      # conv_r(xi)+conv_i(xr)+br+bi

    out_ref[0:cpad, :] = out_real
    out_ref[cpad:2 * cpad, :] = out_imag


# ---------------------------------------------------------------------------
# Module forward
# ---------------------------------------------------------------------------
def global_avg_pool_3d_to_1d(in_real, in_im, wr, wi, br, bi, nele=16):
    # TODO(synk): ComplexDropout only acts in training mode; eval-mode forward
    # is the identity, so it is intentionally a no-op here.
    B, C, D, H, W = in_real.shape
    Cout, Cin, K = wr.shape
    assert Cin == C
    # TODO(synk): non-uniform adaptive-pool windows (W % Nele != 0) not implemented.
    assert W % nele == 0, "uniform adaptive-pool windows only"
    kw = W // nele
    dh = D * H
    cpad = ((Cout + 7) // 8) * 8                # pad Cout to a sublane multiple

    # Free (metadata-only) reshape; keep f32 end to end to match the PyTorch
    # numerics.  (For mem-bound production shapes, feeding bf16 here and
    # accumulating in f32 in-kernel halves the dominant HBM read.)
    xr = in_real.reshape(B, C, dh, W).astype(jnp.float32)
    xi = in_im.reshape(B, C, dh, W).astype(jnp.float32)

    # Pack weights: (K, 2*Cpad, Cin), rows [0:Cpad]=wr (zero padded), [Cpad:]=wi.
    def _pack_w(w):
        wt = jnp.transpose(w, (2, 0, 1)).astype(jnp.float32)     # (K, Cout, Cin)
        return jnp.pad(wt, ((0, 0), (0, cpad - Cout), (0, 0)))
    w_packed = jnp.concatenate([_pack_w(wr), _pack_w(wi)], axis=1)

    # Pack bias: (2*Cpad, 1), rows [0:Cpad]=br-bi, rows [Cpad:]=br+bi.
    b_real = jnp.pad((br - bi).astype(jnp.float32), (0, cpad - Cout))
    b_imag = jnp.pad((br + bi).astype(jnp.float32), (0, cpad - Cout))
    b_packed = jnp.concatenate([b_real, b_imag]).reshape(2 * cpad, 1)

    kernel = functools.partial(
        _fused_kernel, cpad=cpad, k_taps=K, nele=nele, kw=kw, dh=dh, width=W)

    out = pl.pallas_call(
        kernel,
        out_shape=jax.ShapeDtypeStruct((B, 2 * cpad, nele), jnp.float32),
        grid=(B,),
        in_specs=[
            pl.BlockSpec((None, C, dh, W), lambda b: (b, 0, 0, 0)),
            pl.BlockSpec((None, C, dh, W), lambda b: (b, 0, 0, 0)),
            pl.BlockSpec((K, 2 * cpad, C), lambda b: (0, 0, 0)),
            pl.BlockSpec((2 * cpad, 1), lambda b: (0, 0)),
        ],
        out_specs=pl.BlockSpec((None, 2 * cpad, nele), lambda b: (b, 0, 0)),
        compiler_params=pltpu.CompilerParams(
            dimension_semantics=("parallel",)),
    )(xr, xi, w_packed, b_packed)

    out_r = out[:, :Cout, :]                    # (B, Cout, Nele)
    out_i = out[:, cpad:cpad + Cout, :]
    return out_r, out_i


# ---------------------------------------------------------------------------
# Pure-JAX reference (for correctness verification)
# ---------------------------------------------------------------------------
def _reference(in_real, in_im, wr, wi, br, bi, nele):
    B, C, D, H, W = in_real.shape
    kw = W // nele

    def pool(x):
        return x.reshape(B, C, D, H, nele, kw).mean(axis=(2, 3, 5))

    pr, pi = pool(in_real), pool(in_im)

    def conv(x, w, b):
        y = jax.lax.conv_general_dilated(
            x, w, window_strides=(1,), padding=((1, 1),),
            dimension_numbers=("NCH", "OIH", "NCH"))
        return y + b[None, :, None]

    out_r = conv(pr, wr, br) - conv(pi, wi, bi)
    out_i = conv(pi, wr, br) + conv(pr, wi, bi)
    return out_r, out_i


if __name__ == "__main__":
    B, Cin, Cout = 2, 4, 6
    D, H, W = 4, 4, 32
    Nele = 16
    K = 3

    key = jax.random.PRNGKey(0)
    k1, k2, k3, k4, k5, k6 = jax.random.split(key, 6)
    in_real = jax.random.normal(k1, (B, Cin, D, H, W), jnp.float32)
    in_im = jax.random.normal(k2, (B, Cin, D, H, W), jnp.float32)
    # Deterministic synthetic parameters (shapes from ComplexConv1d(Cin, Cout, 3, pad=1)).
    wr = 0.1 * jax.random.normal(k3, (Cout, Cin, K), jnp.float32)
    wi = 0.1 * jax.random.normal(k4, (Cout, Cin, K), jnp.float32)
    br = 0.1 * jax.random.normal(k5, (Cout,), jnp.float32)
    bi = 0.1 * jax.random.normal(k6, (Cout,), jnp.float32)

    out_r, out_i = global_avg_pool_3d_to_1d(in_real, in_im, wr, wi, br, bi, Nele)
    jax.block_until_ready((out_r, out_i))

    ref_r, ref_i = _reference(in_real, in_im, wr, wi, br, bi, Nele)
    assert out_r.shape == (B, Cout, Nele) and out_i.shape == (B, Cout, Nele)
    assert jnp.allclose(out_r, ref_r, atol=1e-4, rtol=1e-4)
    assert jnp.allclose(out_i, ref_i, atol=1e-4, rtol=1e-4)

    print("KERNEL_OK")
</pallas_src>

<mosaic_0001>
module attributes {stable_mosaic.version = 11 : i64} {
  func.func @_fused_kernel(%arg0: i32, %arg1: memref<1x4x16x32xf32, #tpu.memory_space<vmem>>, %arg2: memref<1x4x16x32xf32, #tpu.memory_space<vmem>>, %arg3: memref<3x16x4xf32, #tpu.memory_space<vmem>>, %arg4: memref<16x1xf32, #tpu.memory_space<vmem>>, %arg5: memref<1x16x16xf32, #tpu.memory_space<vmem>>) attributes {dimension_semantics = [#tpu.dimension_semantics<parallel>], iteration_bounds = array<i64: 2>, scalar_prefetch = 0 : i64, scratch_operands = 0 : i64, tpu.core_type = #tpu.core_type<tc>, window_params = [{transform_indices = @transform_0, window_bounds = array<i64: 1, 4, 16, 32>}, {transform_indices = @transform_1, window_bounds = array<i64: 1, 4, 16, 32>}, {pipeline_mode = #tpu.pipeline_mode<synchronous>, transform_indices = @transform_2, window_bounds = array<i64: 3, 16, 4>}, {pipeline_mode = #tpu.pipeline_mode<synchronous>, transform_indices = @transform_3, window_bounds = array<i64: 16, 1>}, {transform_indices = @transform_4, window_bounds = array<i64: 1, 16, 16>}]} {
    %c0 = arith.constant 0 : index
    %c0_0 = arith.constant 0 : index
    %c0_1 = arith.constant 0 : index
    %c0_2 = arith.constant 0 : index
    %0 = vector.load %arg1[%c0, %c0_0, %c0_1, %c0_2] : memref<1x4x16x32xf32, #tpu.memory_space<vmem>>, vector<1x4x16x32xf32>
    %1 = vector.shape_cast %0 : vector<1x4x16x32xf32> to vector<4x16x32xf32>
    %cst = arith.constant dense<0.000000e+00> : vector<4x32xf32>
    %2 = vector.multi_reduction <add>, %1, %cst [1] : vector<4x16x32xf32> to vector<4x32xf32>
    %c0_3 = arith.constant 0 : index
    %c0_4 = arith.constant 0 : index
    %c0_5 = arith.constant 0 : index
    %c0_6 = arith.constant 0 : index
    %3 = vector.load %arg2[%c0_3, %c0_4, %c0_5, %c0_6] : memref<1x4x16x32xf32, #tpu.memory_space<vmem>>, vector<1x4x16x32xf32>
    %4 = vector.shape_cast %3 : vector<1x4x16x32xf32> to vector<4x16x32xf32>
    %cst_7 = arith.constant dense<0.000000e+00> : vector<4x32xf32>
    %5 = vector.multi_reduction <add>, %4, %cst_7 [1] : vector<4x16x32xf32> to vector<4x32xf32>
    %6 = tpu.iota {dimensions = array<i32: 0>} : vector<32x16xi32>
    %7 = tpu.iota {dimensions = array<i32: 1>} : vector<32x16xi32>
    %cst_8 = arith.constant 0.000000e+00 : f32
    %8 = vector.broadcast %cst_8 : f32 to vector<16x16xf32>
    %cst_9 = arith.constant 0.000000e+00 : f32
    %9 = vector.broadcast %cst_9 : f32 to vector<16x16xf32>
    %c-1_i32 = arith.constant -1 : i32
    %10 = vector.broadcast %c-1_i32 : i32 to vector<32x16xi32>
    %11 = arith.addi %7, %10 : vector<32x16xi32>
    %c2_i32 = arith.constant 2 : i32
    %12 = vector.broadcast %c2_i32 : i32 to vector<32x16xi32>
    %13 = arith.muli %11, %12 : vector<32x16xi32>
    %14 = arith.cmpi sge, %6, %13 : vector<32x16xi32>
    %c-1_i32_10 = arith.constant -1 : i32
    %15 = vector.broadcast %c-1_i32_10 : i32 to vector<32x16xi32>
    %16 = arith.addi %7, %15 : vector<32x16xi32>
    %c1_i32 = arith.constant 1 : i32
    %17 = vector.broadcast %c1_i32 : i32 to vector<32x16xi32>
    %18 = arith.addi %16, %17 : vector<32x16xi32>
    %c2_i32_11 = arith.constant 2 : i32
    %19 = vector.broadcast %c2_i32_11 : i32 to vector<32x16xi32>
    %20 = arith.muli %18, %19 : vector<32x16xi32>
    %21 = arith.cmpi slt, %6, %20 : vector<32x16xi32>
    %22 = arith.andi %14, %21 : vector<32x16xi1>
    %cst_12 = arith.constant 3.125000e-02 : f32
    %cst_13 = arith.constant 0.000000e+00 : f32
    %23 = vector.broadcast %cst_12 : f32 to vector<32x16xf32>
    %24 = vector.broadcast %cst_13 : f32 to vector<32x16xf32>
    %25 = arith.select %22, %23, %24 : vector<32x16xi1>, vector<32x16xf32>
    %cst_14 = arith.constant dense<0.000000e+00> : vector<4x16xf32>
    %26 = tpu.matmul %2, %25, %cst_14 {dimension_numbers = #tpu.dot_dimension_numbers<[1], [0], [0], [1], [0, 0, 1, 1], [], []>} : vector<4x32xf32>, vector<32x16xf32>, vector<4x16xf32> -> vector<4x16xf32>
    %cst_15 = arith.constant dense<0.000000e+00> : vector<4x16xf32>
    %27 = tpu.matmul %5, %25, %cst_15 {dimension_numbers = #tpu.dot_dimension_numbers<[1], [0], [0], [1], [0, 0, 1, 1], [], []>} : vector<4x32xf32>, vector<32x16xf32>, vector<4x16xf32> -> vector<4x16xf32>
    %c0_16 = arith.constant 0 : index
    %c0_17 = arith.constant 0 : index
    %c0_18 = arith.constant 0 : index
    %28 = vector.load %arg3[%c0_16, %c0_17, %c0_18] : memref<3x16x4xf32, #tpu.memory_space<vmem>>, vector<1x16x4xf32>
    %29 = vector.shape_cast %28 : vector<1x16x4xf32> to vector<16x4xf32>
    %cst_19 = arith.constant dense<0.000000e+00> : vector<16x16xf32>
    %30 = tpu.matmul %29, %26, %cst_19 {dimension_numbers = #tpu.dot_dimension_numbers<[1], [0], [0], [1], [0, 0, 1, 1], [], []>} : vector<16x4xf32>, vector<4x16xf32>, vector<16x16xf32> -> vector<16x16xf32>
    %31 = arith.addf %8, %30 : vector<16x16xf32>
    %cst_20 = arith.constant dense<0.000000e+00> : vector<16x16xf32>
    %32 = tpu.matmul %29, %27, %cst_20 {dimension_numbers = #tpu.dot_dimension_numbers<[1], [0], [0], [1], [0, 0, 1, 1], [], []>} : vector<16x4xf32>, vector<4x16xf32>, vector<16x16xf32> -> vector<16x16xf32>
    %33 = arith.addf %9, %32 : vector<16x16xf32>
    %c0_i32 = arith.constant 0 : i32
    %34 = vector.broadcast %c0_i32 : i32 to vector<32x16xi32>
    %35 = arith.addi %7, %34 : vector<32x16xi32>
    %c2_i32_21 = arith.constant 2 : i32
    %36 = vector.broadcast %c2_i32_21 : i32 to vector<32x16xi32>
    %37 = arith.muli %35, %36 : vector<32x16xi32>
    %38 = arith.cmpi sge, %6, %37 : vector<32x16xi32>
    %c0_i32_22 = arith.constant 0 : i32
    %39 = vector.broadcast %c0_i32_22 : i32 to vector<32x16xi32>
    %40 = arith.addi %7, %39 : vector<32x16xi32>
    %c1_i32_23 = arith.constant 1 : i32
    %41 = vector.broadcast %c1_i32_23 : i32 to vector<32x16xi32>
    %42 = arith.addi %40, %41 : vector<32x16xi32>
    %c2_i32_24 = arith.constant 2 : i32
    %43 = vector.broadcast %c2_i32_24 : i32 to vector<32x16xi32>
    %44 = arith.muli %42, %43 : vector<32x16xi32>
    %45 = arith.cmpi slt, %6, %44 : vector<32x16xi32>
    %46 = arith.andi %38, %45 : vector<32x16xi1>
    %cst_25 = arith.constant 3.125000e-02 : f32
    %cst_26 = arith.constant 0.000000e+00 : f32
    %47 = vector.broadcast %cst_25 : f32 to vector<32x16xf32>
    %48 = vector.broadcast %cst_26 : f32 to vector<32x16xf32>
    %49 = arith.select %46, %47, %48 : vector<32x16xi1>, vector<32x16xf32>
    %cst_27 = arith.constant dense<0.000000e+00> : vector<4x16xf32>
    %50 = tpu.matmul %2, %49, %cst_27 {dimension_numbers = #tpu.dot_dimension_numbers<[1], [0], [0], [1], [0, 0, 1, 1], [], []>} : vector<4x32xf32>, vector<32x16xf32>, vector<4x16xf32> -> vector<4x16xf32>
    %cst_28 = arith.constant dense<0.000000e+00> : vector<4x16xf32>
    %51 = tpu.matmul %5, %49, %cst_28 {dimension_numbers = #tpu.dot_dimension_numbers<[1], [0], [0], [1], [0, 0, 1, 1], [], []>} : vector<4x32xf32>, vector<32x16xf32>, vector<4x16xf32> -> vector<4x16xf32>
    %c1 = arith.constant 1 : index
    %c0_29 = arith.constant 0 : index
    %c0_30 = arith.constant 0 : index
    %52 = vector.load %arg3[%c1, %c0_29, %c0_30] : memref<3x16x4xf32, #tpu.memory_space<vmem>>, vector<1x16x4xf32>
    %53 = vector.shape_cast %52 : vector<1x16x4xf32> to vector<16x4xf32>
    %cst_31 = arith.constant dense<0.000000e+00> : vector<16x16xf32>
    %54 = tpu.matmul %53, %50, %cst_31 {dimension_numbers = #tpu.dot_dimension_numbers<[1], [0], [0], [1], [0, 0, 1, 1], [], []>} : vector<16x4xf32>, vector<4x16xf32>, vector<16x16xf32> -> vector<16x16xf32>
    %55 = arith.addf %31, %54 : vector<16x16xf32>
    %cst_32 = arith.constant dense<0.000000e+00> : vector<16x16xf32>
    %56 = tpu.matmul %53, %51, %cst_32 {dimension_numbers = #tpu.dot_dimension_numbers<[1], [0], [0], [1], [0, 0, 1, 1], [], []>} : vector<16x4xf32>, vector<4x16xf32>, vector<16x16xf32> -> vector<16x16xf32>
    %57 = arith.addf %33, %56 : vector<16x16xf32>
    %c1_i32_33 = arith.constant 1 : i32
    %58 = vector.broadcast %c1_i32_33 : i32 to vector<32x16xi32>
    %59 = arith.addi %7, %58 : vector<32x16xi32>
    %c2_i32_34 = arith.constant 2 : i32
    %60 = vector.broadcast %c2_i32_34 : i32 to vector<32x16xi32>
    %61 = arith.muli %59, %60 : vector<32x16xi32>
    %62 = arith.cmpi sge, %6, %61 : vector<32x16xi32>
    %c1_i32_35 = arith.constant 1 : i32
    %63 = vector.broadcast %c1_i32_35 : i32 to vector<32x16xi32>
    %64 = arith.addi %7, %63 : vector<32x16xi32>
    %c1_i32_36 = arith.constant 1 : i32
    %65 = vector.broadcast %c1_i32_36 : i32 to vector<32x16xi32>
    %66 = arith.addi %64, %65 : vector<32x16xi32>
    %c2_i32_37 = arith.constant 2 : i32
    %67 = vector.broadcast %c2_i32_37 : i32 to vector<32x16xi32>
    %68 = arith.muli %66, %67 : vector<32x16xi32>
    %69 = arith.cmpi slt, %6, %68 : vector<32x16xi32>
    %70 = arith.andi %62, %69 : vector<32x16xi1>
    %cst_38 = arith.constant 3.125000e-02 : f32
    %cst_39 = arith.constant 0.000000e+00 : f32
    %71 = vector.broadcast %cst_38 : f32 to vector<32x16xf32>
    %72 = vector.broadcast %cst_39 : f32 to vector<32x16xf32>
    %73 = arith.select %70, %71, %72 : vector<32x16xi1>, vector<32x16xf32>
    %cst_40 = arith.constant dense<0.000000e+00> : vector<4x16xf32>
    %74 = tpu.matmul %2, %73, %cst_40 {dimension_numbers = #tpu.dot_dimension_numbers<[1], [0], [0], [1], [0, 0, 1, 1], [], []>} : vector<4x32xf32>, vector<32x16xf32>, vector<4x16xf32> -> vector<4x16xf32>
    %cst_41 = arith.constant dense<0.000000e+00> : vector<4x16xf32>
    %75 = tpu.matmul %5, %73, %cst_41 {dimension_numbers = #tpu.dot_dimension_numbers<[1], [0], [0], [1], [0, 0, 1, 1], [], []>} : vector<4x32xf32>, vector<32x16xf32>, vector<4x16xf32> -> vector<4x16xf32>
    %c2 = arith.constant 2 : index
    %c0_42 = arith.constant 0 : index
    %c0_43 = arith.constant 0 : index
    %76 = vector.load %arg3[%c2, %c0_42, %c0_43] : memref<3x16x4xf32, #tpu.memory_space<vmem>>, vector<1x16x4xf32>
    %77 = vector.shape_cast %76 : vector<1x16x4xf32> to vector<16x4xf32>
    %cst_44 = arith.constant dense<0.000000e+00> : vector<16x16xf32>
    %78 = tpu.matmul %77, %74, %cst_44 {dimension_numbers = #tpu.dot_dimension_numbers<[1], [0], [0], [1], [0, 0, 1, 1], [], []>} : vector<16x4xf32>, vector<4x16xf32>, vector<16x16xf32> -> vector<16x16xf32>
    %79 = arith.addf %55, %78 : vector<16x16xf32>
    %cst_45 = arith.constant dense<0.000000e+00> : vector<16x16xf32>
    %80 = tpu.matmul %77, %75, %cst_45 {dimension_numbers = #tpu.dot_dimension_numbers<[1], [0], [0], [1], [0, 0, 1, 1], [], []>} : vector<16x4xf32>, vector<4x16xf32>, vector<16x16xf32> -> vector<16x16xf32>
    %81 = arith.addf %57, %80 : vector<16x16xf32>
    %c0_46 = arith.constant 0 : index
    %c0_47 = arith.constant 0 : index
    %82 = vector.load %arg4[%c0_46, %c0_47] : memref<16x1xf32, #tpu.memory_space<vmem>>, vector<16x1xf32>
    %83 = vector.extract_strided_slice %79 {offsets = [0, 0], sizes = [8, 16], strides = [1, 1]} : vector<16x16xf32> to vector<8x16xf32>
    %84 = vector.extract_strided_slice %81 {offsets = [8, 0], sizes = [8, 16], strides = [1, 1]} : vector<16x16xf32> to vector<8x16xf32>
    %85 = arith.subf %83, %84 : vector<8x16xf32>
    %86 = vector.extract_strided_slice %82 {offsets = [0, 0], sizes = [8, 1], strides = [1, 1]} : vector<16x1xf32> to vector<8x1xf32>
    %87 = vector.broadcast %86 : vector<8x1xf32> to vector<8x16xf32>
    %88 = arith.addf %85, %87 : vector<8x16xf32>
    %89 = vector.extract_strided_slice %81 {offsets = [0, 0], sizes = [8, 16], strides = [1, 1]} : vector<16x16xf32> to vector<8x16xf32>
    %90 = vector.extract_strided_slice %79 {offsets = [8, 0], sizes = [8, 16], strides = [1, 1]} : vector<16x16xf32> to vector<8x16xf32>
    %91 = arith.addf %89, %90 : vector<8x16xf32>
    %92 = vector.extract_strided_slice %82 {offsets = [8, 0], sizes = [8, 1], strides = [1, 1]} : vector<16x1xf32> to vector<8x1xf32>
    %93 = vector.broadcast %92 : vector<8x1xf32> to vector<8x16xf32>
    %94 = arith.addf %91, %93 : vector<8x16xf32>
    %c0_48 = arith.constant 0 : index
    %c0_49 = arith.constant 0 : index
    %c0_50 = arith.constant 0 : index
    %95 = vector.load %arg5[%c0_48, %c0_49, %c0_50] : memref<1x16x16xf32, #tpu.memory_space<vmem>>, vector<1x8x16xf32>
    %96 = vector.shape_cast %95 : vector<1x8x16xf32> to vector<8x16xf32>
    %97 = vector.shape_cast %88 : vector<8x16xf32> to vector<1x8x16xf32>
    tpu.vector_store %arg5[%c0_48, %c0_49, %c0_50], %97 {strides = array<i32>} : memref<1x16x16xf32, #tpu.memory_space<vmem>>, vector<1x8x16xf32>,
    %c0_51 = arith.constant 0 : index
    %c8 = arith.constant 8 : index
    %c0_52 = arith.constant 0 : index
    %98 = vector.load %arg5[%c0_51, %c8, %c0_52] : memref<1x16x16xf32, #tpu.memory_space<vmem>>, vector<1x8x16xf32>
    %99 = vector.shape_cast %98 : vector<1x8x16xf32> to vector<8x16xf32>
    %100 = vector.shape_cast %94 : vector<8x16xf32> to vector<1x8x16xf32>
    tpu.vector_store %arg5[%c0_51, %c8, %c0_52], %100 {strides = array<i32>} : memref<1x16x16xf32, #tpu.memory_space<vmem>>, vector<1x8x16xf32>,
    return
  }
  func.func @transform_0(%arg0: i32) -> (i32, i32, i32, i32) {
    %c0_i32 = arith.constant 0 : i32
    %c0_i32_0 = arith.constant 0 : i32
    %c0_i32_1 = arith.constant 0 : i32
    %c0_i32_2 = arith.constant 0 : i32
    return %arg0, %c0_i32, %c0_i32_0, %c0_i32_1 : i32, i32, i32, i32
  }
  func.func @transform_1(%arg0: i32) -> (i32, i32, i32, i32) {
    %c0_i32 = arith.constant 0 : i32
    %c0_i32_0 = arith.constant 0 : i32
    %c0_i32_1 = arith.constant 0 : i32
    %c0_i32_2 = arith.constant 0 : i32
    return %arg0, %c0_i32, %c0_i32_0, %c0_i32_1 : i32, i32, i32, i32
  }
  func.func @transform_2(%arg0: i32) -> (i32, i32, i32) {
    %c0_i32 = arith.constant 0 : i32
    %c0_i32_0 = arith.constant 0 : i32
    %c0_i32_1 = arith.constant 0 : i32
    %c0_i32_2 = arith.constant 0 : i32
    return %c0_i32, %c0_i32_0, %c0_i32_1 : i32, i32, i32
  }
  func.func @transform_3(%arg0: i32) -> (i32, i32) {
    %c0_i32 = arith.constant 0 : i32
    %c0_i32_0 = arith.constant 0 : i32
    %c0_i32_1 = arith.constant 0 : i32
    return %c0_i32, %c0_i32_0 : i32, i32
  }
  func.func @transform_4(%arg0: i32) -> (i32, i32, i32) {
    %c0_i32 = arith.constant 0 : i32
    %c0_i32_0 = arith.constant 0 : i32
    %c0_i32_1 = arith.constant 0 : i32
    return %arg0, %c0_i32, %c0_i32_0 : i32, i32, i32
  }
}

</mosaic_0001>

<llo_original>
// kernel: tpu_custom_call.1
$region0: #{tpu_custom_call.1}
  #allocation0 [shape = 'u32[]', space=smem, size = 0x4, offset = 0x4, fixed_abs, tag = 'smem constant byte address 0x4 - core index']
  #allocation1 [shape = 'u32[144,128]{1,0:T(1,128)}', space=vmem, size = 0x12000, scoped, tag = 'internal scratch']
  %s0 = inlined_call_operand.hbm [shape: f32[2,4,16,32], index: 0, kind: input, shape index: {}]
  %s1 = inlined_call_operand.hbm [shape: f32[2,4,16,32], index: 1, kind: input, shape index: {}]
  %s2 = inlined_call_operand.vmem [shape: f32[3,16,4], index: 2, kind: input, shape index: {}]
  %s3 = inlined_call_operand.vmem [shape: f32[16,1], index: 3, kind: input, shape index: {}]
  %s4 = inlined_call_operand.hbm [shape: f32[2,16,16], index: 4, kind: output, shape index: {}]
  %s5 = sld [smem:[#allocation0]]
  $region57: #{tpu_custom_call.1} parent=0
    _
  %s7 = ssub.s32 1, %s5
  %s8 = scalar_select 0, %s7, %s5
  $region1: #{tpu_custom_call.1} parent=0
    #allocation2 [shape = 'u8[65536]{0}', space=vmem, size = 0x10000, scoped, tag = 'input window, operand 0']
    #allocation3 [shape = 's32[2]{0}', space=sflag, size = 0x8, scoped, tag = 'scoped memory for tpu_custom_call.1']
    #allocation4 [shape = 's32[2]{0}', space=sflag, size = 0x8, scoped, tag = 'scoped memory for tpu_custom_call.1']
    #allocation5 [shape = 'u8[65536]{0}', space=vmem, size = 0x10000, scoped, tag = 'input window, operand 1']
    #allocation6 [shape = 's32[2]{0}', space=sflag, size = 0x8, scoped, tag = 'scoped memory for tpu_custom_call.1']
    #allocation7 [shape = 'u8[16384]{0}', space=vmem, size = 0x4000, scoped, tag = 'output window, operand 0']
    %9 = vsyncpa [#allocation3], 0
    %s10 = scalar_lea.sflag [#allocation3], 1
    %11 = vsyncpa %s10, 0
    %12 = vsyncpa [#allocation6], 0
    %s13 = scalar_lea.sflag [#allocation6], 1
    %14 = vsyncpa %s13, 0
    %15 = vsyncpa [#allocation4], 0
    %s16 = scalar_lea.sflag [#allocation4], 1
    %17 = vsyncpa %s16, 0
    loop: start=0, step=1, limit=4
    $region2: #{tpu_custom_call.1} parent=1 // loop_pre_header
      _
    $region3: #{tpu_custom_call.1} parent=1 // loop_header
      %s19 = sphi 0, %s23
      %p20 = scmp.ge.s32.totalorder %s19, 4
      %s29 = sphi 0, %s31
      %s32 = sphi 0, %s29
      %s33 = sphi 0, %s32
      %s49 = sphi 0, %s33
      %s55 = sphi 0, %s57
      %s58 = sphi 0, %s55
      %s59 = sphi 0, %s58
      %s75 = sphi 0, %s59
      %s79 = sphi 0, %s79
      %s81 = sphi 0, %s79
      %s82 = sphi 0, %s81
      %s96 = sphi 0, %s82
      %s100 = sphi 0, %s100
      %s102 = sphi 0, %s100
      %s103 = sphi 0, %s102
      %s117 = sphi 0, %s103
      %s123 = sphi 0, %s125
      %s126 = sphi 0, %s123
      %s127 = sphi 0, %s126
      %s143 = sphi 0, %s127
    $region4: #{tpu_custom_call.1} parent=1 // loop_header_branch
      %22 = sbr.rel (%p20) target = $region8
    $region5: #{tpu_custom_call.1} parent=1 // loop_body
      %s24 = ssub.s32 %s19, 1
      %s25 = ssub.s32 %s19, 2
      %s26 = sadd.s32 %s19, 1
      %s27 = ssub.s32 %s19, %s26
      %p28 = scmp.eq.s32.totalorder %s27, 0
      %s30 = sadd.s32 %s29, 1
      %s31 = scalar_select %p28, %s29, %s30
      %p34 = pneg %p28
      %p35 = scmp.eq.s32.totalorder %s19, 1
      %p36 = por %p34, %p35
      %p37 = scmp.ne.s32.totalorder %s29, %s32
      %p38 = scmp.eq.s32.totalorder %s19, 0
      %p39 = por %p37, %p38
      %p40 = scmp.ne.s32.totalorder %s29, %s32
      %p41 = scmp.eq.s32.totalorder %s24, 1
      %p42 = por %p40, %p41
      %p43 = scmp.ne.s32.totalorder %s32, %s33
      %p44 = scmp.eq.s32.totalorder %s24, 0
      %p45 = por %p43, %p44
      %p46 = scmp.ne.s32.totalorder %s32, %s33
      %p47 = scmp.eq.s32.totalorder %s25, 1
      %p48 = por %p46, %p47
      %p50 = scmp.ne.s32.totalorder %s33, %s49
      %p51 = scmp.eq.s32.totalorder %s25, 0
      %p52 = por %p50, %p51
      %s53 = ssub.s32 %s19, %s26
      %p54 = scmp.eq.s32.totalorder %s53, 0
      %s56 = sadd.s32 %s55, 1
      %s57 = scalar_select %p54, %s55, %s56
      %p60 = pneg %p54
      %p61 = scmp.eq.s32.totalorder %s19, 1
      %p62 = por %p60, %p61
      %p63 = scmp.ne.s32.totalorder %s55, %s58
      %p64 = scmp.eq.s32.totalorder %s19, 0
      %p65 = por %p63, %p64
      %p66 = scmp.ne.s32.totalorder %s55, %s58
      %p67 = scmp.eq.s32.totalorder %s24, 1
      %p68 = por %p66, %p67
      %p69 = scmp.ne.s32.totalorder %s58, %s59
      %p70 = scmp.eq.s32.totalorder %s24, 0
      %p71 = por %p69, %p70
      %p72 = scmp.ne.s32.totalorder %s58, %s59
      %p73 = scmp.eq.s32.totalorder %s25, 1
      %p74 = por %p72, %p73
      %p76 = scmp.ne.s32.totalorder %s59, %s75
      %p77 = scmp.eq.s32.totalorder %s25, 0
      %p78 = por %p76, %p77
      %s80 = sadd.s32 %s79, 1
      %p83 = scmp.eq.s32.totalorder %s19, 1
      %p84 = scmp.ne.s32.totalorder %s79, %s81
      %p85 = scmp.eq.s32.totalorder %s19, 0
      %p86 = por %p84, %p85
      %p87 = scmp.ne.s32.totalorder %s79, %s81
      %p88 = scmp.eq.s32.totalorder %s24, 1
      %p89 = por %p87, %p88
      %p90 = scmp.ne.s32.totalorder %s81, %s82
      %p91 = scmp.eq.s32.totalorder %s24, 0
      %p92 = por %p90, %p91
      %p93 = scmp.ne.s32.totalorder %s81, %s82
      %p94 = scmp.eq.s32.totalorder %s25, 1
      %p95 = por %p93, %p94
      %p97 = scmp.ne.s32.totalorder %s82, %s96
      %p98 = scmp.eq.s32.totalorder %s25, 0
      %p99 = por %p97, %p98
      %s101 = sadd.s32 %s100, 1
      %p104 = scmp.eq.s32.totalorder %s19, 1
      %p105 = scmp.ne.s32.totalorder %s100, %s102
      %p106 = scmp.eq.s32.totalorder %s19, 0
      %p107 = por %p105, %p106
      %p108 = scmp.ne.s32.totalorder %s100, %s102
      %p109 = scmp.eq.s32.totalorder %s24, 1
      %p110 = por %p108, %p109
      %p111 = scmp.ne.s32.totalorder %s102, %s103
      %p112 = scmp.eq.s32.totalorder %s24, 0
      %p113 = por %p111, %p112
      %p114 = scmp.ne.s32.totalorder %s102, %s103
      %p115 = scmp.eq.s32.totalorder %s25, 1
      %p116 = por %p114, %p115
      %p118 = scmp.ne.s32.totalorder %s103, %s117
      %p119 = scmp.eq.s32.totalorder %s25, 0
      %p120 = por %p118, %p119
      %s121 = ssub.s32 %s19, %s26
      %p122 = scmp.eq.s32.totalorder %s121, 0
      %s124 = sadd.s32 %s123, 1
      %s125 = scalar_select %p122, %s123, %s124
      %p128 = pneg %p122
      %p129 = scmp.eq.s32.totalorder %s19, 1
      %p130 = por %p128, %p129
      %p131 = scmp.ne.s32.totalorder %s123, %s126
      %p132 = scmp.eq.s32.totalorder %s19, 0
      %p133 = por %p131, %p132
      %p134 = scmp.ne.s32.totalorder %s123, %s126
      %p135 = scmp.eq.s32.totalorder %s24, 1
      %p136 = por %p134, %p135
      %p137 = scmp.ne.s32.totalorder %s126, %s127
      %p138 = scmp.eq.s32.totalorder %s24, 0
      %p139 = por %p137, %p138
      %p140 = scmp.ne.s32.totalorder %s126, %s127
      %p141 = scmp.eq.s32.totalorder %s25, 1
      %p142 = por %p140, %p141
      %p144 = scmp.ne.s32.totalorder %s127, %s143
      %p145 = scmp.eq.s32.totalorder %s25, 0
      %p146 = por %p144, %p145
      %p147 = scmp.le.s32.totalorder 1, %s19
      %p148 = scmp.lt.s32.totalorder %s19, 3
      %p149 = pnand %p147, %p148
      %p150 = pneg %p149
      // Predicated region
      $region9: #{tpu_custom_call.1} parent=5 // pred_check
        _
      $region10: #{tpu_custom_call.1} parent=5 // pred_check_branch
        %152 = sbr.rel (%p149) target = $region12
      $region11: #{tpu_custom_call.1} parent=5 // pred_region
        %s153 = ssub.s32 %s19, 1
        // Predicated region
        $region13: #{tpu_custom_call.1} parent=11 // pred_check
          %p154 = pneg %p92
        $region14: #{tpu_custom_call.1} parent=11 // pred_check_branch
          %156 = sbr.rel (%p154) target = $region16
        $region15: #{tpu_custom_call.1} parent=11 // pred_region
          _
        $region16: #{tpu_custom_call.1} parent=11 // pred_fallthru
          _
        // Predicated region
        $region17: #{tpu_custom_call.1} parent=11 // pred_check
          %p157 = pneg %p113
        $region18: #{tpu_custom_call.1} parent=11 // pred_check_branch
          %159 = sbr.rel (%p157) target = $region20
        $region19: #{tpu_custom_call.1} parent=11 // pred_region
          _
        $region20: #{tpu_custom_call.1} parent=11 // pred_fallthru
          _
      $region12: #{tpu_custom_call.1} parent=5 // pred_fallthru
        _
      %p160 = scmp.lt.s32.totalorder %s19, 2
      // Predicated region
      $region21: #{tpu_custom_call.1} parent=5 // pred_check
        %p161 = pneg %p160
      $region22: #{tpu_custom_call.1} parent=5 // pred_check_branch
        %163 = sbr.rel (%p161) target = $region24
      $region23: #{tpu_custom_call.1} parent=5 // pred_region
        // Predicated region
        $region25: #{tpu_custom_call.1} parent=23 // pred_check
          %p164 = pneg %p39
        $region26: #{tpu_custom_call.1} parent=23 // pred_check_branch
          %166 = sbr.rel (%p164) target = $region28
        $region27: #{tpu_custom_call.1} parent=23 // pred_region
          %s167 = sand.u32 %s29, 1
          %s168 = scalar_lea.sflag [#allocation3], %s167
          %s169 = sand.u32 %s29, 1
          %s170 = smul.addr %s169, 64
          %s171 = scalar_lea.vmem [#allocation2], %s170
          %s173 = ssub.s32 1024, 1024
          %174 = vsyncadd %s168, %s173
          %s175 = smul.addr %s19, 8
          %s176 = smul.addr %s175, 128
          %s177 = scalar_lea.hbm %s0, %s176
          %s178 = sshll.u32 %s171, 4
          %s179 = int_to_ptr.vmem [resolvable:$true] %s178
          %184 = dma.hbm_to_vmem [thread:$0]  %s177, 1024, %s179, %s168, 128, 128, 8
        $region28: #{tpu_custom_call.1} parent=23 // pred_fallthru
          _
        // Predicated region
        $region29: #{tpu_custom_call.1} parent=23 // pred_check
          %p185 = pneg %p65
        $region30: #{tpu_custom_call.1} parent=23 // pred_check_branch
          %187 = sbr.rel (%p185) target = $region32
        $region31: #{tpu_custom_call.1} parent=23 // pred_region
          %s188 = sand.u32 %s55, 1
          %s189 = scalar_lea.sflag [#allocation6], %s188
          %s190 = sand.u32 %s55, 1
          %s191 = smul.addr %s190, 64
          %s192 = scalar_lea.vmem [#allocation5], %s191
          %s194 = ssub.s32 1024, 1024
          %195 = vsyncadd %s189, %s194
          %s196 = smul.addr %s19, 8
          %s197 = smul.addr %s196, 128
          %s198 = scalar_lea.hbm %s1, %s197
          %s199 = sshll.u32 %s192, 4
          %s200 = int_to_ptr.vmem [resolvable:$true] %s199
          %205 = dma.hbm_to_vmem [thread:$0]  %s198, 1024, %s200, %s189, 128, 128, 8
        $region32: #{tpu_custom_call.1} parent=23 // pred_fallthru
          _
      $region24: #{tpu_custom_call.1} parent=5 // pred_fallthru
        _
      %p206 = scmp.le.s32.totalorder 1, %s19
      %p207 = scmp.lt.s32.totalorder %s19, 3
      %p208 = pnand %p206, %p207
      %p209 = pneg %p208
      // Predicated region
      $region33: #{tpu_custom_call.1} parent=5 // pred_check
        _
      $region34: #{tpu_custom_call.1} parent=5 // pred_check_branch
        %211 = sbr.rel (%p208) target = $region36
      $region35: #{tpu_custom_call.1} parent=5 // pred_region
        %s212 = ssub.s32 %s19, 1
        %s213 = sand.u32 %s32, 1
        %s214 = scalar_lea.sflag [#allocation3], %s213
        %s215 = sand.u32 %s32, 1
        %s216 = smul.addr %s215, 64
        %s217 = scalar_lea.vmem [#allocation2], %s216
        // Predicated region
        $region37: #{tpu_custom_call.1} parent=35 // pred_check
          %p218 = pneg %p45
        $region38: #{tpu_custom_call.1} parent=35 // pred_check_branch
          %220 = sbr.rel (%p218) target = $region40
        $region39: #{tpu_custom_call.1} parent=35 // pred_region
          %221 = dma.done %s214, 1024
        $region40: #{tpu_custom_call.1} parent=35 // pred_fallthru
          _
        %s222 = sand.u32 %s58, 1
        %s223 = scalar_lea.sflag [#allocation6], %s222
        %s224 = sand.u32 %s58, 1
        %s225 = smul.addr %s224, 64
        %s226 = scalar_lea.vmem [#allocation5], %s225
        // Predicated region
        $region41: #{tpu_custom_call.1} parent=35 // pred_check
          %p227 = pneg %p71
        $region42: #{tpu_custom_call.1} parent=35 // pred_check_branch
          %229 = sbr.rel (%p227) target = $region44
        $region43: #{tpu_custom_call.1} parent=35 // pred_region
          %230 = dma.done %s223, 1024
        $region44: #{tpu_custom_call.1} parent=35 // pred_fallthru
          _
        %s231 = sand.u32 %s32, 1
        %s232 = scalar_lea.sflag [#allocation3], %s231
        %s233 = sand.u32 %s32, 1
        %s234 = smul.addr %s233, 64
        %s235 = scalar_lea.vmem [#allocation2], %s234
        %p236 = pneg %p45
        %p237 = pneg %p42
        %s238 = sand.u32 %s58, 1
        %s239 = scalar_lea.sflag [#allocation6], %s238
        %s240 = sand.u32 %s58, 1
        %s241 = smul.addr %s240, 64
        %s242 = scalar_lea.vmem [#allocation5], %s241
        %p243 = pneg %p71
        %p244 = pneg %p68
        %p245 = pneg %p92
        %p246 = pneg %p89
        %p247 = pneg %p113
        %p248 = pneg %p110
        %p249 = pneg %p139
        %p250 = pneg %p136
        %s251 = sand.u32 %s126, 1
        %s252 = scalar_lea.sflag [#allocation4], %s251
        %s253 = sand.u32 %s126, 1
        %s254 = smul.addr %s253, 16
        %s255 = scalar_lea.vmem [#allocation7], %s254
        %v256 = vld [vmem:[%s217] sm:$0xff]
        %v257 = vld [vmem:[%s217 + $0x8] sm:$0xff]
        %v258 = vld [vmem:[%s217 + $0x10] sm:$0xff]
        %v259 = vld [vmem:[%s217 + $0x18] sm:$0xff]
        %v260 = vld [vmem:[%s217 + $0x20] sm:$0xff]
        %v261 = vld [vmem:[%s217 + $0x28] sm:$0xff]
        %v262 = vld [vmem:[%s217 + $0x30] sm:$0xff]
        %v263 = vld [vmem:[%s217 + $0x38] sm:$0xff]
        %vm264 = vcmask 261120
        %v265 = vsel %vm264, %v256, 0.0
        %v266 = vsel %vm264, %v257, 0.0
        %v267 = vadd.f32 %v265, %v266
        %v268 = vrot.slane %v267, 4
        %v269 = vadd.f32 %v267, %v268
        %v270 = vrot.slane %v269, 2
        %v271 = vadd.f32 %v269, %v270
        %v272 = vrot.slane %v271, 1
        %v273 = vadd.f32 %v271, %v272
        %v274 = vsel %vm264, %v258, 0.0
        %v275 = vsel %vm264, %v259, 0.0
        %v276 = vadd.f32 %v274, %v275
        %v277 = vrot.slane %v276, 4
        %v278 = vadd.f32 %v276, %v277
        %v279 = vrot.slane %v278, 2
        %v280 = vadd.f32 %v278, %v279
        %v281 = vrot.slane %v280, 1
        %v282 = vadd.f32 %v280, %v281
        %v283 = vsel %vm264, %v260, 0.0
        %v284 = vsel %vm264, %v261, 0.0
        %v285 = vadd.f32 %v283, %v284
        %v286 = vrot.slane %v285, 4
        %v287 = vadd.f32 %v285, %v286
        %v288 = vrot.slane %v287, 2
        %v289 = vadd.f32 %v287, %v288
        %v290 = vrot.slane %v289, 1
        %v291 = vadd.f32 %v289, %v290
        %v292 = vsel %vm264, %v262, 0.0
        %v293 = vsel %vm264, %v263, 0.0
        %v294 = vadd.f32 %v292, %v293
        %v295 = vrot.slane %v294, 4
        %v296 = vadd.f32 %v294, %v295
        %v297 = vrot.slane %v296, 2
        %v298 = vadd.f32 %v296, %v297
        %v299 = vrot.slane %v298, 1
        %v300 = vadd.f32 %v298, %v299
        %v301 = vld [vmem:[%s226] sm:$0xff]
        %v302 = vld [vmem:[%s226 + $0x8] sm:$0xff]
        %v303 = vld [vmem:[%s226 + $0x10] sm:$0xff]
        %v304 = vld [vmem:[%s226 + $0x18] sm:$0xff]
        %v305 = vld [vmem:[%s226 + $0x20] sm:$0xff]
        %v306 = vld [vmem:[%s226 + $0x28] sm:$0xff]
        %v307 = vld [vmem:[%s226 + $0x30] sm:$0xff]
        %v308 = vld [vmem:[%s226 + $0x38] sm:$0xff]
        %v309 = vsel %vm264, %v301, 0.0
        %v310 = vsel %vm264, %v302, 0.0
        %v311 = vadd.f32 %v309, %v310
        %v312 = vrot.slane %v311, 4
        %v313 = vadd.f32 %v311, %v312
        %v314 = vrot.slane %v313, 2
        %v315 = vadd.f32 %v313, %v314
        %v316 = vrot.slane %v315, 1
        %v317 = vadd.f32 %v315, %v316
        %v318 = vsel %vm264, %v303, 0.0
        %v319 = vsel %vm264, %v304, 0.0
        %v320 = vadd.f32 %v318, %v319
        %v321 = vrot.slane %v320, 4
        %v322 = vadd.f32 %v320, %v321
        %v323 = vrot.slane %v322, 2
        %v324 = vadd.f32 %v322, %v323
        %v325 = vrot.slane %v324, 1
        %v326 = vadd.f32 %v324, %v325
        %v327 = vsel %vm264, %v305, 0.0
        %v328 = vsel %vm264, %v306, 0.0
        %v329 = vadd.f32 %v327, %v328
        %v330 = vrot.slane %v329, 4
        %v331 = vadd.f32 %v329, %v330
        %v332 = vrot.slane %v331, 2
        %v333 = vadd.f32 %v331, %v332
        %v334 = vrot.slane %v333, 1
        %v335 = vadd.f32 %v333, %v334
        %v336 = vsel %vm264, %v307, 0.0
        %v337 = vsel %vm264, %v308, 0.0
        %v338 = vadd.f32 %v336, %v337
        %v339 = vrot.slane %v338, 4
        %v340 = vadd.f32 %v338, %v339
        %v341 = vrot.slane %v340, 2
        %v342 = vadd.f32 %v340, %v341
        %v343 = vrot.slane %v342, 1
        %v344 = vadd.f32 %v342, %v343
        %v345 = vlaneseq
        %v346 = vshrl.u32 %v345, 7
        %v347 = vadd.s32 %v346, 8
        %v348 = vadd.s32 %v346, 16
        %v349 = vadd.s32 %v346, 24
        %v350 = vlaneseq
        %v351 = vand.u32 %v350, 127
        %v352 = vadd.s32 %v351, 4294967295
        %v353 = vmul.u32 %v352, 2
        %vm354 = vcmp.ge.s32.totalorder %v346, %v353
        %vm355 = vcmp.ge.s32.totalorder %v347, %v353
        %vm356 = vcmp.ge.s32.totalorder %v348, %v353
        %vm357 = vcmp.ge.s32.totalorder %v349, %v353
        %v358 = vadd.s32 %v352, 1
        %v359 = vmul.u32 %v358, 2
        %vm360 = vcmp.lt.s32.totalorder %v346, %v359
        %vm361 = vcmp.lt.s32.totalorder %v347, %v359
        %vm362 = vcmp.lt.s32.totalorder %v348, %v359
        %vm363 = vcmp.lt.s32.totalorder %v349, %v359
        %vm364 = vmand %vm354, %vm360
        %vm365 = vmand %vm355, %vm361
        %vm366 = vmand %vm356, %vm362
        %vm367 = vmand %vm357, %vm363
        %v368 = vsel %vm364, 0.03125, 0.0
        %v369 = vsel %vm365, 0.03125, 0.0
        %v370 = vsel %vm366, 0.03125, 0.0
        %v371 = vsel %vm367, 0.03125, 0.0
        %vm376 = vcmask 1041409
        %v377 = vsel %vm376, %v282, %v273
        %vm378 = vcmask 1042434
        %v379 = vsel %vm378, %v291, %v377
        %vm380 = vcmask 1043459
        %v381 = vsel %vm380, %v300, %v379
        %v382 = vsel %vm264, %v381, 0
        %384 = vmatprep.subr.mxu0 0.0
        %385 = vmatpush1.msra.mxu0 0.0
        %386 = vmatprep.subr.mxu0 0.0
        %387 = vmatpush1.msra.mxu0 0.0
        %388 = vmatprep.subr.mxu0 0.0
        %389 = vmatpush1.msra.mxu0 0.0
        %390 = vmatprep.subr.mxu0 0.0
        %391 = vmatpush1.msra.mxu0 0.0
        %392 = vmatprep.subr.mxu0 0.0
        %393 = vmatpush1.msra.mxu0 0.0
        %394 = vmatprep.subr.mxu0 0.0
        %395 = vmatpush1.msra.mxu0 0.0
        %396 = vmatprep.subr.mxu0 0.0
        %397 = vmatpush1.msra.mxu0 0.0
        %398 = vmatprep.subr.mxu0 0.0
        %399 = vmatpush1.msra.mxu0 0.0
        %400 = vmatprep.subr.mxu0 0.0
        %401 = vmatpush1.msra.mxu0 0.0
        %402 = vmatprep.subr.mxu0 0.0
        %403 = vmatpush1.msra.mxu0 0.0
        %404 = vmatprep.subr.mxu0 0.0
        %405 = vmatpush1.msra.mxu0 0.0
        %406 = vmatprep.subr.mxu0 0.0
        %407 = vmatpush1.msra.mxu0 0.0
        %408 = vmatprep.subr.mxu0 0.0
        %409 = vmatpush1.msra.mxu0 %v371
        %410 = vmatprep.subr.mxu0 0.0
        %411 = vmatpush1.msra.mxu0 %v370
        %412 = vmatprep.subr.mxu0 0.0
        %413 = vmatpush1.msra.mxu0 %v369
        %414 = vmatprep.subr.mxu0 0.0
        %415 = vmatpush1.msra.mxu0 %v368
        %416 = vmatprep.subr.mxu0 0.0
        %417 = vmatpush2.msra.mxu0 0.0
        %418 = vmatprep.subr.mxu0 0.0
        %419 = vmatpush2.msra.mxu0 0.0
        %420 = vmatprep.subr.mxu0 0.0
        %421 = vmatpush2.msra.mxu0 0.0
        %422 = vmatprep.subr.mxu0 0.0
        %423 = vmatpush2.msra.mxu0 0.0
        %424 = vmatprep.subr.mxu0 0.0
        %425 = vmatpush2.msra.mxu0 0.0
        %426 = vmatprep.subr.mxu0 0.0
        %427 = vmatpush2.msra.mxu0 0.0
        %428 = vmatprep.subr.mxu0 0.0
        %429 = vmatpush2.msra.mxu0 0.0
        %430 = vmatprep.subr.mxu0 0.0
        %431 = vmatpush2.msra.mxu0 0.0
        %432 = vmatprep.subr.mxu0 0.0
        %433 = vmatpush2.msra.mxu0 0.0
        %434 = vmatprep.subr.mxu0 0.0
        %435 = vmatpush2.msra.mxu0 0.0
        %436 = vmatprep.subr.mxu0 0.0
        %437 = vmatpush2.msra.mxu0 0.0
        %438 = vmatprep.subr.mxu0 0.0
        %439 = vmatpush2.msra.mxu0 0.0
        %440 = vmatprep.subr.mxu0 0.0
        %441 = vmatpush2.msra.mxu0 0.0
        %442 = vmatprep.subr.mxu0 0.0
        %443 = vmatpush2.msra.mxu0 0.0
        %444 = vmatprep.subr.mxu0 0.0
        %445 = vmatpush2.msra.mxu0 0.0
        %446 = vmatprep.subr.mxu0 0.0
        %447 = vmatpush2.msra.mxu0 0.0
        %448 = vmatprep.mubr.f32.mxu0 0.0
        %449 = vmatmul.mubr.f32.gmra.mxu0 %v382
        %v450 = vpop.f32.mrf.mxu0
        %v451 = vadd.f32 0.0, %v450
        %v452 = vpop.f32.mrf.mxu0
        %453 = vdwg.mxu0
        %v458 = vsel %vm376, %v326, %v317
        %v459 = vsel %vm378, %v335, %v458
        %v460 = vsel %vm380, %v344, %v459
        %v461 = vsel %vm264, %v460, 0
        %463 = vmatprep.subr.mxu0 0.0
        %464 = vmatpush1.msra.mxu0 0.0
        %465 = vmatprep.subr.mxu0 0.0
        %466 = vmatpush1.msra.mxu0 0.0
        %467 = vmatprep.subr.mxu0 0.0
        %468 = vmatpush1.msra.mxu0 0.0
        %469 = vmatprep.subr.mxu0 0.0
        %470 = vmatpush1.msra.mxu0 0.0
        %471 = vmatprep.subr.mxu0 0.0
        %472 = vmatpush1.msra.mxu0 0.0
        %473 = vmatprep.subr.mxu0 0.0
        %474 = vmatpush1.msra.mxu0 0.0
        %475 = vmatprep.subr.mxu0 0.0
        %476 = vmatpush1.msra.mxu0 0.0
        %477 = vmatprep.subr.mxu0 0.0
        %478 = vmatpush1.msra.mxu0 0.0
        %479 = vmatprep.subr.mxu0 0.0
        %480 = vmatpush1.msra.mxu0 0.0
        %481 = vmatprep.subr.mxu0 0.0
        %482 = vmatpush1.msra.mxu0 0.0
        %483 = vmatprep.subr.mxu0 0.0
        %484 = vmatpush1.msra.mxu0 0.0
        %485 = vmatprep.subr.mxu0 0.0
        %486 = vmatpush1.msra.mxu0 0.0
        %487 = vmatprep.subr.mxu0 0.0
        %488 = vmatpush1.msra.mxu0 %v371
        %489 = vmatprep.subr.mxu0 0.0
        %490 = vmatpush1.msra.mxu0 %v370
        %491 = vmatprep.subr.mxu0 0.0
        %492 = vmatpush1.msra.mxu0 %v369
        %493 = vmatprep.subr.mxu0 0.0
        %494 = vmatpush1.msra.mxu0 %v368
        %495 = vmatprep.subr.mxu0 0.0
        %496 = vmatpush2.msra.mxu0 0.0
        %497 = vmatprep.subr.mxu0 0.0
        %498 = vmatpush2.msra.mxu0 0.0
        %499 = vmatprep.subr.mxu0 0.0
        %500 = vmatpush2.msra.mxu0 0.0
        %501 = vmatprep.subr.mxu0 0.0
        %502 = vmatpush2.msra.mxu0 0.0
        %503 = vmatprep.subr.mxu0 0.0
        %504 = vmatpush2.msra.mxu0 0.0
        %505 = vmatprep.subr.mxu0 0.0
        %506 = vmatpush2.msra.mxu0 0.0
        %507 = vmatprep.subr.mxu0 0.0
        %508 = vmatpush2.msra.mxu0 0.0
        %509 = vmatprep.subr.mxu0 0.0
        %510 = vmatpush2.msra.mxu0 0.0
        %511 = vmatprep.subr.mxu0 0.0
        %512 = vmatpush2.msra.mxu0 0.0
        %513 = vmatprep.subr.mxu0 0.0
        %514 = vmatpush2.msra.mxu0 0.0
        %515 = vmatprep.subr.mxu0 0.0
        %516 = vmatpush2.msra.mxu0 0.0
        %517 = vmatprep.subr.mxu0 0.0
        %518 = vmatpush2.msra.mxu0 0.0
        %519 = vmatprep.subr.mxu0 0.0
        %520 = vmatpush2.msra.mxu0 0.0
        %521 = vmatprep.subr.mxu0 0.0
        %522 = vmatpush2.msra.mxu0 0.0
        %523 = vmatprep.subr.mxu0 0.0
        %524 = vmatpush2.msra.mxu0 0.0
        %525 = vmatprep.subr.mxu0 0.0
        %526 = vmatpush2.msra.mxu0 0.0
        %527 = vmatprep.mubr.f32.mxu0 0.0
        %528 = vmatmul.mubr.f32.gmra.mxu0 %v461
        %v529 = vpop.f32.mrf.mxu0
        %v530 = vadd.f32 0.0, %v529
        %v531 = vpop.f32.mrf.mxu0
        %532 = vdwg.mxu0
        %v533 = vld [vmem:[%s2] sm:$0xff]
        %v534 = vld [vmem:[%s2 + $0x8] sm:$0xff]
        %v535 = vmul.u32 %v351, 2
        %vm536 = vcmp.ge.s32.totalorder %v346, %v535
        %vm537 = vcmp.ge.s32.totalorder %v347, %v535
        %vm538 = vcmp.ge.s32.totalorder %v348, %v535
        %vm539 = vcmp.ge.s32.totalorder %v349, %v535
        %v540 = vadd.s32 %v351, 1
        %v541 = vmul.u32 %v540, 2
        %vm542 = vcmp.lt.s32.totalorder %v346, %v541
        %vm543 = vcmp.lt.s32.totalorder %v347, %v541
        %vm544 = vcmp.lt.s32.totalorder %v348, %v541
        %vm545 = vcmp.lt.s32.totalorder %v349, %v541
        %vm546 = vmand %vm536, %vm542
        %vm547 = vmand %vm537, %vm543
        %vm548 = vmand %vm538, %vm544
        %vm549 = vmand %vm539, %vm545
        %v550 = vsel %vm546, 0.03125, 0.0
        %v551 = vsel %vm547, 0.03125, 0.0
        %v552 = vsel %vm548, 0.03125, 0.0
        %v553 = vsel %vm549, 0.03125, 0.0
        %554 = vmatprep.subr.mxu0 0.0
        %555 = vmatpush1.msra.mxu0 0.0
        %556 = vmatprep.subr.mxu0 0.0
        %557 = vmatpush1.msra.mxu0 0.0
        %558 = vmatprep.subr.mxu0 0.0
        %559 = vmatpush1.msra.mxu0 0.0
        %560 = vmatprep.subr.mxu0 0.0
        %561 = vmatpush1.msra.mxu0 0.0
        %562 = vmatprep.subr.mxu0 0.0
        %563 = vmatpush1.msra.mxu0 0.0
        %564 = vmatprep.subr.mxu0 0.0
        %565 = vmatpush1.msra.mxu0 0.0
        %566 = vmatprep.subr.mxu0 0.0
        %567 = vmatpush1.msra.mxu0 0.0
        %568 = vmatprep.subr.mxu0 0.0
        %569 = vmatpush1.msra.mxu0 0.0
        %570 = vmatprep.subr.mxu0 0.0
        %571 = vmatpush1.msra.mxu0 0.0
        %572 = vmatprep.subr.mxu0 0.0
        %573 = vmatpush1.msra.mxu0 0.0
        %574 = vmatprep.subr.mxu0 0.0
        %575 = vmatpush1.msra.mxu0 0.0
        %576 = vmatprep.subr.mxu0 0.0
        %577 = vmatpush1.msra.mxu0 0.0
        %578 = vmatprep.subr.mxu0 0.0
        %579 = vmatpush1.msra.mxu0 %v553
        %580 = vmatprep.subr.mxu0 0.0
        %581 = vmatpush1.msra.mxu0 %v552
        %582 = vmatprep.subr.mxu0 0.0
        %583 = vmatpush1.msra.mxu0 %v551
        %584 = vmatprep.subr.mxu0 0.0
        %585 = vmatpush1.msra.mxu0 %v550
        %586 = vmatprep.subr.mxu0 0.0
        %587 = vmatpush2.msra.mxu0 0.0
        %588 = vmatprep.subr.mxu0 0.0
        %589 = vmatpush2.msra.mxu0 0.0
        %590 = vmatprep.subr.mxu0 0.0
        %591 = vmatpush2.msra.mxu0 0.0
        %592 = vmatprep.subr.mxu0 0.0
        %593 = vmatpush2.msra.mxu0 0.0
        %594 = vmatprep.subr.mxu0 0.0
        %595 = vmatpush2.msra.mxu0 0.0
        %596 = vmatprep.subr.mxu0 0.0
        %597 = vmatpush2.msra.mxu0 0.0
        %598 = vmatprep.subr.mxu0 0.0
        %599 = vmatpush2.msra.mxu0 0.0
        %600 = vmatprep.subr.mxu0 0.0
        %601 = vmatpush2.msra.mxu0 0.0
        %602 = vmatprep.subr.mxu0 0.0
        %603 = vmatpush2.msra.mxu0 0.0
        %604 = vmatprep.subr.mxu0 0.0
        %605 = vmatpush2.msra.mxu0 0.0
        %606 = vmatprep.subr.mxu0 0.0
        %607 = vmatpush2.msra.mxu0 0.0
        %608 = vmatprep.subr.mxu0 0.0
        %609 = vmatpush2.msra.mxu0 0.0
        %610 = vmatprep.subr.mxu0 0.0
        %611 = vmatpush2.msra.mxu0 0.0
        %612 = vmatprep.subr.mxu0 0.0
        %613 = vmatpush2.msra.mxu0 0.0
        %614 = vmatprep.subr.mxu0 0.0
        %615 = vmatpush2.msra.mxu0 0.0
        %616 = vmatprep.subr.mxu0 0.0
        %617 = vmatpush2.msra.mxu0 0.0
        %618 = vmatprep.mubr.f32.mxu0 0.0
        %619 = vmatmul.mubr.f32.gmra.mxu0 %v382
        %v620 = vpop.f32.mrf.mxu0
        %v621 = vadd.f32 0.0, %v620
        %v622 = vpop.f32.mrf.mxu0
        %623 = vdwg.mxu0
        %624 = vmatprep.subr.mxu0 0.0
        %625 = vmatpush1.msra.mxu0 0.0
        %626 = vmatprep.subr.mxu0 0.0
        %627 = vmatpush1.msra.mxu0 0.0
        %628 = vmatprep.subr.mxu0 0.0
        %629 = vmatpush1.msra.mxu0 0.0
        %630 = vmatprep.subr.mxu0 0.0
        %631 = vmatpush1.msra.mxu0 0.0
        %632 = vmatprep.subr.mxu0 0.0
        %633 = vmatpush1.msra.mxu0 0.0
        %634 = vmatprep.subr.mxu0 0.0
        %635 = vmatpush1.msra.mxu0 0.0
        %636 = vmatprep.subr.mxu0 0.0
        %637 = vmatpush1.msra.mxu0 0.0
        %638 = vmatprep.subr.mxu0 0.0
        %639 = vmatpush1.msra.mxu0 0.0
        %640 = vmatprep.subr.mxu0 0.0
        %641 = vmatpush1.msra.mxu0 0.0
        %642 = vmatprep.subr.mxu0 0.0
        %643 = vmatpush1.msra.mxu0 0.0
        %644 = vmatprep.subr.mxu0 0.0
        %645 = vmatpush1.msra.mxu0 0.0
        %646 = vmatprep.subr.mxu0 0.0
        %647 = vmatpush1.msra.mxu0 0.0
        %648 = vmatprep.subr.mxu0 0.0
        %649 = vmatpush1.msra.mxu0 %v553
        %650 = vmatprep.subr.mxu0 0.0
        %651 = vmatpush1.msra.mxu0 %v552
        %652 = vmatprep.subr.mxu0 0.0
        %653 = vmatpush1.msra.mxu0 %v551
        %654 = vmatprep.subr.mxu0 0.0
        %655 = vmatpush1.msra.mxu0 %v550
        %656 = vmatprep.subr.mxu0 0.0
        %657 = vmatpush2.msra.mxu0 0.0
        %658 = vmatprep.subr.mxu0 0.0
        %659 = vmatpush2.msra.mxu0 0.0
        %660 = vmatprep.subr.mxu0 0.0
        %661 = vmatpush2.msra.mxu0 0.0
        %662 = vmatprep.subr.mxu0 0.0
        %663 = vmatpush2.msra.mxu0 0.0
        %664 = vmatprep.subr.mxu0 0.0
        %665 = vmatpush2.msra.mxu0 0.0
        %666 = vmatprep.subr.mxu0 0.0
        %667 = vmatpush2.msra.mxu0 0.0
        %668 = vmatprep.subr.mxu0 0.0
        %669 = vmatpush2.msra.mxu0 0.0
        %670 = vmatprep.subr.mxu0 0.0
        %671 = vmatpush2.msra.mxu0 0.0
        %672 = vmatprep.subr.mxu0 0.0
        %673 = vmatpush2.msra.mxu0 0.0
        %674 = vmatprep.subr.mxu0 0.0
        %675 = vmatpush2.msra.mxu0 0.0
        %676 = vmatprep.subr.mxu0 0.0
        %677 = vmatpush2.msra.mxu0 0.0
        %678 = vmatprep.subr.mxu0 0.0
        %679 = vmatpush2.msra.mxu0 0.0
        %680 = vmatprep.subr.mxu0 0.0
        %681 = vmatpush2.msra.mxu0 0.0
        %682 = vmatprep.subr.mxu0 0.0
        %683 = vmatpush2.msra.mxu0 0.0
        %684 = vmatprep.subr.mxu0 0.0
        %685 = vmatpush2.msra.mxu0 0.0
        %686 = vmatprep.subr.mxu0 0.0
        %687 = vmatpush2.msra.mxu0 0.0
        %688 = vmatprep.mubr.f32.mxu0 0.0
        %689 = vmatmul.mubr.f32.gmra.mxu0 %v461
        %v690 = vpop.f32.mrf.mxu0
        %v691 = vadd.f32 0.0, %v690
        %v692 = vpop.f32.mrf.mxu0
        %693 = vdwg.mxu0
        %s694 = scalar_lea.vmem %s2, 16
        %v695 = vld [vmem:[%s694] sm:$0xff]
        %v696 = vld [vmem:[%s694 + $0x8] sm:$0xff]
        %vm697 = vcmask 31744
        %v699 = vsel %vm697, %v695, 0
        %v702 = vsel %vm697, %v696, 0
        %vm704 = vcmask 1043456
        %v706 = vsel %vm704, %v621, 0
        %708 = vmatprep.subr.mxu0 0.0
        %709 = vmatpush1.msra.mxu0 0.0
        %710 = vmatprep.subr.mxu0 0.0
        %711 = vmatpush1.msra.mxu0 0.0
        %712 = vmatprep.subr.mxu0 0.0
        %713 = vmatpush1.msra.mxu0 0.0
        %714 = vmatprep.subr.mxu0 0.0
        %715 = vmatpush1.msra.mxu0 0.0
        %716 = vmatprep.subr.mxu0 0.0
        %717 = vmatpush1.msra.mxu0 0.0
        %718 = vmatprep.subr.mxu0 0.0
        %719 = vmatpush1.msra.mxu0 0.0
        %720 = vmatprep.subr.mxu0 0.0
        %721 = vmatpush1.msra.mxu0 0.0
        %722 = vmatprep.subr.mxu0 0.0
        %723 = vmatpush1.msra.mxu0 0.0
        %724 = vmatprep.subr.mxu0 0.0
        %725 = vmatpush1.msra.mxu0 0.0
        %726 = vmatprep.subr.mxu0 0.0
        %727 = vmatpush1.msra.mxu0 0.0
        %728 = vmatprep.subr.mxu0 0.0
        %729 = vmatpush1.msra.mxu0 0.0
        %730 = vmatprep.subr.mxu0 0.0
        %731 = vmatpush1.msra.mxu0 0.0
        %732 = vmatprep.subr.mxu0 0.0
        %733 = vmatpush1.msra.mxu0 0.0
        %734 = vmatprep.subr.mxu0 0.0
        %735 = vmatpush1.msra.mxu0 0.0
        %736 = vmatprep.subr.mxu0 0.0
        %737 = vmatpush1.msra.mxu0 0.0
        %738 = vmatprep.subr.mxu0 0.0
        %739 = vmatpush1.msra.mxu0 %v706
        %740 = vmatprep.subr.mxu0 0.0
        %741 = vmatpush2.msra.mxu0 0.0
        %742 = vmatprep.subr.mxu0 0.0
        %743 = vmatpush2.msra.mxu0 0.0
        %744 = vmatprep.subr.mxu0 0.0
        %745 = vmatpush2.msra.mxu0 0.0
        %746 = vmatprep.subr.mxu0 0.0
        %747 = vmatpush2.msra.mxu0 0.0
        %748 = vmatprep.subr.mxu0 0.0
        %749 = vmatpush2.msra.mxu0 0.0
        %750 = vmatprep.subr.mxu0 0.0
        %751 = vmatpush2.msra.mxu0 0.0
        %752 = vmatprep.subr.mxu0 0.0
        %753 = vmatpush2.msra.mxu0 0.0
        %754 = vmatprep.subr.mxu0 0.0
        %755 = vmatpush2.msra.mxu0 0.0
        %756 = vmatprep.subr.mxu0 0.0
        %757 = vmatpush2.msra.mxu0 0.0
        %758 = vmatprep.subr.mxu0 0.0
        %759 = vmatpush2.msra.mxu0 0.0
        %760 = vmatprep.subr.mxu0 0.0
        %761 = vmatpush2.msra.mxu0 0.0
        %762 = vmatprep.subr.mxu0 0.0
        %763 = vmatpush2.msra.mxu0 0.0
        %764 = vmatprep.subr.mxu0 0.0
        %765 = vmatpush2.msra.mxu0 0.0
        %766 = vmatprep.subr.mxu0 0.0
        %767 = vmatpush2.msra.mxu0 0.0
        %768 = vmatprep.subr.mxu0 0.0
        %769 = vmatpush2.msra.mxu0 0.0
        %770 = vmatprep.subr.mxu0 0.0
        %771 = vmatpush2.msra.mxu0 0.0
        %772 = vmatprep.mubr.f32.mxu0 0.0
        %773 = vmatmul.mubr.f32.gmra.mxu0 %v699
        %v774 = vpop.f32.mrf.mxu0
        %v775 = vadd.f32 0.0, %v774
        %v776 = vpop.f32.mrf.mxu0
        %777 = vmatprep.mubr.f32.mxu0 0.0
        %778 = vmatmul.mubr.f32.gmra.mxu0 %v702
        %v779 = vpop.f32.mrf.mxu0
        %v780 = vadd.f32 0.0, %v779
        %v781 = vpop.f32.mrf.mxu0
        %782 = vdwg.mxu0
        %v784 = vsel %vm697, %v533, 0
        %v787 = vsel %vm697, %v534, 0
        %v790 = vsel %vm704, %v451, 0
        %792 = vmatprep.subr.mxu0 0.0
        %793 = vmatpush1.msra.mxu0 0.0
        %794 = vmatprep.subr.mxu0 0.0
        %795 = vmatpush1.msra.mxu0 0.0
        %796 = vmatprep.subr.mxu0 0.0
        %797 = vmatpush1.msra.mxu0 0.0
        %798 = vmatprep.subr.mxu0 0.0
        %799 = vmatpush1.msra.mxu0 0.0
        %800 = vmatprep.subr.mxu0 0.0
        %801 = vmatpush1.msra.mxu0 0.0
        %802 = vmatprep.subr.mxu0 0.0
        %803 = vmatpush1.msra.mxu0 0.0
        %804 = vmatprep.subr.mxu0 0.0
        %805 = vmatpush1.msra.mxu0 0.0
        %806 = vmatprep.subr.mxu0 0.0
        %807 = vmatpush1.msra.mxu0 0.0
        %808 = vmatprep.subr.mxu0 0.0
        %809 = vmatpush1.msra.mxu0 0.0
        %810 = vmatprep.subr.mxu0 0.0
        %811 = vmatpush1.msra.mxu0 0.0
        %812 = vmatprep.subr.mxu0 0.0
        %813 = vmatpush1.msra.mxu0 0.0
        %814 = vmatprep.subr.mxu0 0.0
        %815 = vmatpush1.msra.mxu0 0.0
        %816 = vmatprep.subr.mxu0 0.0
        %817 = vmatpush1.msra.mxu0 0.0
        %818 = vmatprep.subr.mxu0 0.0
        %819 = vmatpush1.msra.mxu0 0.0
        %820 = vmatprep.subr.mxu0 0.0
        %821 = vmatpush1.msra.mxu0 0.0
        %822 = vmatprep.subr.mxu0 0.0
        %823 = vmatpush1.msra.mxu0 %v790
        %824 = vmatprep.subr.mxu0 0.0
        %825 = vmatpush2.msra.mxu0 0.0
        %826 = vmatprep.subr.mxu0 0.0
        %827 = vmatpush2.msra.mxu0 0.0
        %828 = vmatprep.subr.mxu0 0.0
        %829 = vmatpush2.msra.mxu0 0.0
        %830 = vmatprep.subr.mxu0 0.0
        %831 = vmatpush2.msra.mxu0 0.0
        %832 = vmatprep.subr.mxu0 0.0
        %833 = vmatpush2.msra.mxu0 0.0
        %834 = vmatprep.subr.mxu0 0.0
        %835 = vmatpush2.msra.mxu0 0.0
        %836 = vmatprep.subr.mxu0 0.0
        %837 = vmatpush2.msra.mxu0 0.0
        %838 = vmatprep.subr.mxu0 0.0
        %839 = vmatpush2.msra.mxu0 0.0
        %840 = vmatprep.subr.mxu0 0.0
        %841 = vmatpush2.msra.mxu0 0.0
        %842 = vmatprep.subr.mxu0 0.0
        %843 = vmatpush2.msra.mxu0 0.0
        %844 = vmatprep.subr.mxu0 0.0
        %845 = vmatpush2.msra.mxu0 0.0
        %846 = vmatprep.subr.mxu0 0.0
        %847 = vmatpush2.msra.mxu0 0.0
        %848 = vmatprep.subr.mxu0 0.0
        %849 = vmatpush2.msra.mxu0 0.0
        %850 = vmatprep.subr.mxu0 0.0
        %851 = vmatpush2.msra.mxu0 0.0
        %852 = vmatprep.subr.mxu0 0.0
        %853 = vmatpush2.msra.mxu0 0.0
        %854 = vmatprep.subr.mxu0 0.0
        %855 = vmatpush2.msra.mxu0 0.0
        %856 = vmatprep.mubr.f32.mxu0 0.0
        %857 = vmatmul.mubr.f32.gmra.mxu0 %v784
        %v858 = vpop.f32.mrf.mxu0
        %v859 = vadd.f32 %v775, %v858
        %v860 = vpop.f32.mrf.mxu0
        %861 = vmatprep.mubr.f32.mxu0 0.0
        %862 = vmatmul.mubr.f32.gmra.mxu0 %v787
        %v863 = vpop.f32.mrf.mxu0
        %v864 = vadd.f32 %v780, %v863
        %v865 = vpop.f32.mrf.mxu0
        %866 = vdwg.mxu0
        %v868 = vsel %vm704, %v691, 0
        %870 = vmatprep.subr.mxu0 0.0
        %871 = vmatpush1.msra.mxu0 0.0
        %872 = vmatprep.subr.mxu0 0.0
        %873 = vmatpush1.msra.mxu0 0.0
        %874 = vmatprep.subr.mxu0 0.0
        %875 = vmatpush1.msra.mxu0 0.0
        %876 = vmatprep.subr.mxu0 0.0
        %877 = vmatpush1.msra.mxu0 0.0
        %878 = vmatprep.subr.mxu0 0.0
        %879 = vmatpush1.msra.mxu0 0.0
        %880 = vmatprep.subr.mxu0 0.0
        %881 = vmatpush1.msra.mxu0 0.0
        %882 = vmatprep.subr.mxu0 0.0
        %883 = vmatpush1.msra.mxu0 0.0
        %884 = vmatprep.subr.mxu0 0.0
        %885 = vmatpush1.msra.mxu0 0.0
        %886 = vmatprep.subr.mxu0 0.0
        %887 = vmatpush1.msra.mxu0 0.0
        %888 = vmatprep.subr.mxu0 0.0
        %889 = vmatpush1.msra.mxu0 0.0
        %890 = vmatprep.subr.mxu0 0.0
        %891 = vmatpush1.msra.mxu0 0.0
        %892 = vmatprep.subr.mxu0 0.0
        %893 = vmatpush1.msra.mxu0 0.0
        %894 = vmatprep.subr.mxu0 0.0
        %895 = vmatpush1.msra.mxu0 0.0
        %896 = vmatprep.subr.mxu0 0.0
        %897 = vmatpush1.msra.mxu0 0.0
        %898 = vmatprep.subr.mxu0 0.0
        %899 = vmatpush1.msra.mxu0 0.0
        %900 = vmatprep.subr.mxu0 0.0
        %901 = vmatpush1.msra.mxu0 %v868
        %902 = vmatprep.subr.mxu0 0.0
        %903 = vmatpush2.msra.mxu0 0.0
        %904 = vmatprep.subr.mxu0 0.0
        %905 = vmatpush2.msra.mxu0 0.0
        %906 = vmatprep.subr.mxu0 0.0
        %907 = vmatpush2.msra.mxu0 0.0
        %908 = vmatprep.subr.mxu0 0.0
        %909 = vmatpush2.msra.mxu0 0.0
        %910 = vmatprep.subr.mxu0 0.0
        %911 = vmatpush2.msra.mxu0 0.0
        %912 = vmatprep.subr.mxu0 0.0
        %913 = vmatpush2.msra.mxu0 0.0
        %914 = vmatprep.subr.mxu0 0.0
        %915 = vmatpush2.msra.mxu0 0.0
        %916 = vmatprep.subr.mxu0 0.0
        %917 = vmatpush2.msra.mxu0 0.0
        %918 = vmatprep.subr.mxu0 0.0
        %919 = vmatpush2.msra.mxu0 0.0
        %920 = vmatprep.subr.mxu0 0.0
        %921 = vmatpush2.msra.mxu0 0.0
        %922 = vmatprep.subr.mxu0 0.0
        %923 = vmatpush2.msra.mxu0 0.0
        %924 = vmatprep.subr.mxu0 0.0
        %925 = vmatpush2.msra.mxu0 0.0
        %926 = vmatprep.subr.mxu0 0.0
        %927 = vmatpush2.msra.mxu0 0.0
        %928 = vmatprep.subr.mxu0 0.0
        %929 = vmatpush2.msra.mxu0 0.0
        %930 = vmatprep.subr.mxu0 0.0
        %931 = vmatpush2.msra.mxu0 0.0
        %932 = vmatprep.subr.mxu0 0.0
        %933 = vmatpush2.msra.mxu0 0.0
        %934 = vmatprep.mubr.f32.mxu0 0.0
        %935 = vmatmul.mubr.f32.gmra.mxu0 %v699
        %v936 = vpop.f32.mrf.mxu0
        %v937 = vadd.f32 0.0, %v936
        %v938 = vpop.f32.mrf.mxu0
        %939 = vmatprep.mubr.f32.mxu0 0.0
        %940 = vmatmul.mubr.f32.gmra.mxu0 %v702
        %v941 = vpop.f32.mrf.mxu0
        %v942 = vadd.f32 0.0, %v941
        %v943 = vpop.f32.mrf.mxu0
        %944 = vdwg.mxu0
        %v946 = vsel %vm704, %v530, 0
        %948 = vmatprep.subr.mxu0 0.0
        %949 = vmatpush1.msra.mxu0 0.0
        %950 = vmatprep.subr.mxu0 0.0
        %951 = vmatpush1.msra.mxu0 0.0
        %952 = vmatprep.subr.mxu0 0.0
        %953 = vmatpush1.msra.mxu0 0.0
        %954 = vmatprep.subr.mxu0 0.0
        %955 = vmatpush1.msra.mxu0 0.0
        %956 = vmatprep.subr.mxu0 0.0
        %957 = vmatpush1.msra.mxu0 0.0
        %958 = vmatprep.subr.mxu0 0.0
        %959 = vmatpush1.msra.mxu0 0.0
        %960 = vmatprep.subr.mxu0 0.0
        %961 = vmatpush1.msra.mxu0 0.0
        %962 = vmatprep.subr.mxu0 0.0
        %963 = vmatpush1.msra.mxu0 0.0
        %964 = vmatprep.subr.mxu0 0.0
        %965 = vmatpush1.msra.mxu0 0.0
        %966 = vmatprep.subr.mxu0 0.0
        %967 = vmatpush1.msra.mxu0 0.0
        %968 = vmatprep.subr.mxu0 0.0
        %969 = vmatpush1.msra.mxu0 0.0
        %970 = vmatprep.subr.mxu0 0.0
        %971 = vmatpush1.msra.mxu0 0.0
        %972 = vmatprep.subr.mxu0 0.0
        %973 = vmatpush1.msra.mxu0 0.0
        %974 = vmatprep.subr.mxu0 0.0
        %975 = vmatpush1.msra.mxu0 0.0
        %976 = vmatprep.subr.mxu0 0.0
        %977 = vmatpush1.msra.mxu0 0.0
        %978 = vmatprep.subr.mxu0 0.0
        %979 = vmatpush1.msra.mxu0 %v946
        %980 = vmatprep.subr.mxu0 0.0
        %981 = vmatpush2.msra.mxu0 0.0
        %982 = vmatprep.subr.mxu0 0.0
        %983 = vmatpush2.msra.mxu0 0.0
        %984 = vmatprep.subr.mxu0 0.0
        %985 = vmatpush2.msra.mxu0 0.0
        %986 = vmatprep.subr.mxu0 0.0
        %987 = vmatpush2.msra.mxu0 0.0
        %988 = vmatprep.subr.mxu0 0.0
        %989 = vmatpush2.msra.mxu0 0.0
        %990 = vmatprep.subr.mxu0 0.0
        %991 = vmatpush2.msra.mxu0 0.0
        %992 = vmatprep.subr.mxu0 0.0
        %993 = vmatpush2.msra.mxu0 0.0
        %994 = vmatprep.subr.mxu0 0.0
        %995 = vmatpush2.msra.mxu0 0.0
        %996 = vmatprep.subr.mxu0 0.0
        %997 = vmatpush2.msra.mxu0 0.0
        %998 = vmatprep.subr.mxu0 0.0
        %999 = vmatpush2.msra.mxu0 0.0
        %1000 = vmatprep.subr.mxu0 0.0
        %1001 = vmatpush2.msra.mxu0 0.0
        %1002 = vmatprep.subr.mxu0 0.0
        %1003 = vmatpush2.msra.mxu0 0.0
        %1004 = vmatprep.subr.mxu0 0.0
        %1005 = vmatpush2.msra.mxu0 0.0
        %1006 = vmatprep.subr.mxu0 0.0
        %1007 = vmatpush2.msra.mxu0 0.0
        %1008 = vmatprep.subr.mxu0 0.0
        %1009 = vmatpush2.msra.mxu0 0.0
        %1010 = vmatprep.subr.mxu0 0.0
        %1011 = vmatpush2.msra.mxu0 0.0
        %1012 = vmatprep.mubr.f32.mxu0 0.0
        %1013 = vmatmul.mubr.f32.gmra.mxu0 %v784
        %v1014 = vpop.f32.mrf.mxu0
        %v1015 = vadd.f32 %v937, %v1014
        %v1016 = vpop.f32.mrf.mxu0
        %1017 = vmatprep.mubr.f32.mxu0 0.0
        %1018 = vmatmul.mubr.f32.gmra.mxu0 %v787
        %v1019 = vpop.f32.mrf.mxu0
        %v1020 = vadd.f32 %v942, %v1019
        %v1021 = vpop.f32.mrf.mxu0
        %1022 = vdwg.mxu0
        %vm1023 = vcmp.ge.s32.totalorder %v346, %v541
        %vm1024 = vcmp.ge.s32.totalorder %v347, %v541
        %vm1025 = vcmp.ge.s32.totalorder %v348, %v541
        %vm1026 = vcmp.ge.s32.totalorder %v349, %v541
        %v1027 = vadd.s32 %v540, 1
        %v1028 = vmul.u32 %v1027, 2
        %vm1029 = vcmp.lt.s32.totalorder %v346, %v1028
        %vm1030 = vcmp.lt.s32.totalorder %v347, %v1028
        %vm1031 = vcmp.lt.s32.totalorder %v348, %v1028
        %vm1032 = vcmp.lt.s32.totalorder %v349, %v1028
        %vm1033 = vmand %vm1023, %vm1029
        %vm1034 = vmand %vm1024, %vm1030
        %vm1035 = vmand %vm1025, %vm1031
        %vm1036 = vmand %vm1026, %vm1032
        %v1037 = vsel %vm1033, 0.03125, 0.0
        %v1038 = vsel %vm1034, 0.03125, 0.0
        %v1039 = vsel %vm1035, 0.03125, 0.0
        %v1040 = vsel %vm1036, 0.03125, 0.0
        %1041 = vmatprep.subr.mxu0 0.0
        %1042 = vmatpush1.msra.mxu0 0.0
        %1043 = vmatprep.subr.mxu0 0.0
        %1044 = vmatpush1.msra.mxu0 0.0
        %1045 = vmatprep.subr.mxu0 0.0
        %1046 = vmatpush1.msra.mxu0 0.0
        %1047 = vmatprep.subr.mxu0 0.0
        %1048 = vmatpush1.msra.mxu0 0.0
        %1049 = vmatprep.subr.mxu0 0.0
        %1050 = vmatpush1.msra.mxu0 0.0
        %1051 = vmatprep.subr.mxu0 0.0
        %1052 = vmatpush1.msra.mxu0 0.0
        %1053 = vmatprep.subr.mxu0 0.0
        %1054 = vmatpush1.msra.mxu0 0.0
        %1055 = vmatprep.subr.mxu0 0.0
        %1056 = vmatpush1.msra.mxu0 0.0
        %1057 = vmatprep.subr.mxu0 0.0
        %1058 = vmatpush1.msra.mxu0 0.0
        %1059 = vmatprep.subr.mxu0 0.0
        %1060 = vmatpush1.msra.mxu0 0.0
        %1061 = vmatprep.subr.mxu0 0.0
        %1062 = vmatpush1.msra.mxu0 0.0
        %1063 = vmatprep.subr.mxu0 0.0
        %1064 = vmatpush1.msra.mxu0 0.0
        %1065 = vmatprep.subr.mxu0 0.0
        %1066 = vmatpush1.msra.mxu0 %v1040
        %1067 = vmatprep.subr.mxu0 0.0
        %1068 = vmatpush1.msra.mxu0 %v1039
        %1069 = vmatprep.subr.mxu0 0.0
        %1070 = vmatpush1.msra.mxu0 %v1038
        %1071 = vmatprep.subr.mxu0 0.0
        %1072 = vmatpush1.msra.mxu0 %v1037
        %1073 = vmatprep.subr.mxu0 0.0
        %1074 = vmatpush2.msra.mxu0 0.0
        %1075 = vmatprep.subr.mxu0 0.0
        %1076 = vmatpush2.msra.mxu0 0.0
        %1077 = vmatprep.subr.mxu0 0.0
        %1078 = vmatpush2.msra.mxu0 0.0
        %1079 = vmatprep.subr.mxu0 0.0
        %1080 = vmatpush2.msra.mxu0 0.0
        %1081 = vmatprep.subr.mxu0 0.0
        %1082 = vmatpush2.msra.mxu0 0.0
        %1083 = vmatprep.subr.mxu0 0.0
        %1084 = vmatpush2.msra.mxu0 0.0
        %1085 = vmatprep.subr.mxu0 0.0
        %1086 = vmatpush2.msra.mxu0 0.0
        %1087 = vmatprep.subr.mxu0 0.0
        %1088 = vmatpush2.msra.mxu0 0.0
        %1089 = vmatprep.subr.mxu0 0.0
        %1090 = vmatpush2.msra.mxu0 0.0
        %1091 = vmatprep.subr.mxu0 0.0
        %1092 = vmatpush2.msra.mxu0 0.0
        %1093 = vmatprep.subr.mxu0 0.0
        %1094 = vmatpush2.msra.mxu0 0.0
        %1095 = vmatprep.subr.mxu0 0.0
        %1096 = vmatpush2.msra.mxu0 0.0
        %1097 = vmatprep.subr.mxu0 0.0
        %1098 = vmatpush2.msra.mxu0 0.0
        %1099 = vmatprep.subr.mxu0 0.0
        %1100 = vmatpush2.msra.mxu0 0.0
        %1101 = vmatprep.subr.mxu0 0.0
        %1102 = vmatpush2.msra.mxu0 0.0
        %1103 = vmatprep.subr.mxu0 0.0
        %1104 = vmatpush2.msra.mxu0 0.0
        %1105 = vmatprep.mubr.f32.mxu0 0.0
        %1106 = vmatmul.mubr.f32.gmra.mxu0 %v382
        %v1107 = vpop.f32.mrf.mxu0
        %v1108 = vadd.f32 0.0, %v1107
        %v1109 = vpop.f32.mrf.mxu0
        %1110 = vdwg.mxu0
        %1111 = vmatprep.subr.mxu0 0.0
        %1112 = vmatpush1.msra.mxu0 0.0
        %1113 = vmatprep.subr.mxu0 0.0
        %1114 = vmatpush1.msra.mxu0 0.0
        %1115 = vmatprep.subr.mxu0 0.0
        %1116 = vmatpush1.msra.mxu0 0.0
        %1117 = vmatprep.subr.mxu0 0.0
        %1118 = vmatpush1.msra.mxu0 0.0
        %1119 = vmatprep.subr.mxu0 0.0
        %1120 = vmatpush1.msra.mxu0 0.0
        %1121 = vmatprep.subr.mxu0 0.0
        %1122 = vmatpush1.msra.mxu0 0.0
        %1123 = vmatprep.subr.mxu0 0.0
        %1124 = vmatpush1.msra.mxu0 0.0
        %1125 = vmatprep.subr.mxu0 0.0
        %1126 = vmatpush1.msra.mxu0 0.0
        %1127 = vmatprep.subr.mxu0 0.0
        %1128 = vmatpush1.msra.mxu0 0.0
        %1129 = vmatprep.subr.mxu0 0.0
        %1130 = vmatpush1.msra.mxu0 0.0
        %1131 = vmatprep.subr.mxu0 0.0
        %1132 = vmatpush1.msra.mxu0 0.0
        %1133 = vmatprep.subr.mxu0 0.0
        %1134 = vmatpush1.msra.mxu0 0.0
        %1135 = vmatprep.subr.mxu0 0.0
        %1136 = vmatpush1.msra.mxu0 %v1040
        %1137 = vmatprep.subr.mxu0 0.0
        %1138 = vmatpush1.msra.mxu0 %v1039
        %1139 = vmatprep.subr.mxu0 0.0
        %1140 = vmatpush1.msra.mxu0 %v1038
        %1141 = vmatprep.subr.mxu0 0.0
        %1142 = vmatpush1.msra.mxu0 %v1037
        %1143 = vmatprep.subr.mxu0 0.0
        %1144 = vmatpush2.msra.mxu0 0.0
        %1145 = vmatprep.subr.mxu0 0.0
        %1146 = vmatpush2.msra.mxu0 0.0
        %1147 = vmatprep.subr.mxu0 0.0
        %1148 = vmatpush2.msra.mxu0 0.0
        %1149 = vmatprep.subr.mxu0 0.0
        %1150 = vmatpush2.msra.mxu0 0.0
        %1151 = vmatprep.subr.mxu0 0.0
        %1152 = vmatpush2.msra.mxu0 0.0
        %1153 = vmatprep.subr.mxu0 0.0
        %1154 = vmatpush2.msra.mxu0 0.0
        %1155 = vmatprep.subr.mxu0 0.0
        %1156 = vmatpush2.msra.mxu0 0.0
        %1157 = vmatprep.subr.mxu0 0.0
        %1158 = vmatpush2.msra.mxu0 0.0
        %1159 = vmatprep.subr.mxu0 0.0
        %1160 = vmatpush2.msra.mxu0 0.0
        %1161 = vmatprep.subr.mxu0 0.0
        %1162 = vmatpush2.msra.mxu0 0.0
        %1163 = vmatprep.subr.mxu0 0.0
        %1164 = vmatpush2.msra.mxu0 0.0
        %1165 = vmatprep.subr.mxu0 0.0
        %1166 = vmatpush2.msra.mxu0 0.0
        %1167 = vmatprep.subr.mxu0 0.0
        %1168 = vmatpush2.msra.mxu0 0.0
        %1169 = vmatprep.subr.mxu0 0.0
        %1170 = vmatpush2.msra.mxu0 0.0
        %1171 = vmatprep.subr.mxu0 0.0
        %1172 = vmatpush2.msra.mxu0 0.0
        %1173 = vmatprep.subr.mxu0 0.0
        %1174 = vmatpush2.msra.mxu0 0.0
        %1175 = vmatprep.mubr.f32.mxu0 0.0
        %1176 = vmatmul.mubr.f32.gmra.mxu0 %v461
        %v1177 = vpop.f32.mrf.mxu0
        %v1178 = vadd.f32 0.0, %v1177
        %v1179 = vpop.f32.mrf.mxu0
        %1180 = vdwg.mxu0
        %s1181 = scalar_lea.vmem %s2, 32
        %v1182 = vld [vmem:[%s1181] sm:$0xff]
        %v1183 = vld [vmem:[%s1181 + $0x8] sm:$0xff]
        %v1185 = vsel %vm697, %v1182, 0
        %v1188 = vsel %vm697, %v1183, 0
        %v1191 = vsel %vm704, %v1108, 0
        %1193 = vmatprep.subr.mxu0 0.0
        %1194 = vmatpush1.msra.mxu0 0.0
        %1195 = vmatprep.subr.mxu0 0.0
        %1196 = vmatpush1.msra.mxu0 0.0
        %1197 = vmatprep.subr.mxu0 0.0
        %1198 = vmatpush1.msra.mxu0 0.0
        %1199 = vmatprep.subr.mxu0 0.0
        %1200 = vmatpush1.msra.mxu0 0.0
        %1201 = vmatprep.subr.mxu0 0.0
        %1202 = vmatpush1.msra.mxu0 0.0
        %1203 = vmatprep.subr.mxu0 0.0
        %1204 = vmatpush1.msra.mxu0 0.0
        %1205 = vmatprep.subr.mxu0 0.0
        %1206 = vmatpush1.msra.mxu0 0.0
        %1207 = vmatprep.subr.mxu0 0.0
        %1208 = vmatpush1.msra.mxu0 0.0
        %1209 = vmatprep.subr.mxu0 0.0
        %1210 = vmatpush1.msra.mxu0 0.0
        %1211 = vmatprep.subr.mxu0 0.0
        %1212 = vmatpush1.msra.mxu0 0.0
        %1213 = vmatprep.subr.mxu0 0.0
        %1214 = vmatpush1.msra.mxu0 0.0
        %1215 = vmatprep.subr.mxu0 0.0
        %1216 = vmatpush1.msra.mxu0 0.0
        %1217 = vmatprep.subr.mxu0 0.0
        %1218 = vmatpush1.msra.mxu0 0.0
        %1219 = vmatprep.subr.mxu0 0.0
        %1220 = vmatpush1.msra.mxu0 0.0
        %1221 = vmatprep.subr.mxu0 0.0
        %1222 = vmatpush1.msra.mxu0 0.0
        %1223 = vmatprep.subr.mxu0 0.0
        %1224 = vmatpush1.msra.mxu0 %v1191
        %1225 = vmatprep.subr.mxu0 0.0
        %1226 = vmatpush2.msra.mxu0 0.0
        %1227 = vmatprep.subr.mxu0 0.0
        %1228 = vmatpush2.msra.mxu0 0.0
        %1229 = vmatprep.subr.mxu0 0.0
        %1230 = vmatpush2.msra.mxu0 0.0
        %1231 = vmatprep.subr.mxu0 0.0
        %1232 = vmatpush2.msra.mxu0 0.0
        %1233 = vmatprep.subr.mxu0 0.0
        %1234 = vmatpush2.msra.mxu0 0.0
        %1235 = vmatprep.subr.mxu0 0.0
        %1236 = vmatpush2.msra.mxu0 0.0
        %1237 = vmatprep.subr.mxu0 0.0
        %1238 = vmatpush2.msra.mxu0 0.0
        %1239 = vmatprep.subr.mxu0 0.0
        %1240 = vmatpush2.msra.mxu0 0.0
        %1241 = vmatprep.subr.mxu0 0.0
        %1242 = vmatpush2.msra.mxu0 0.0
        %1243 = vmatprep.subr.mxu0 0.0
        %1244 = vmatpush2.msra.mxu0 0.0
        %1245 = vmatprep.subr.mxu0 0.0
        %1246 = vmatpush2.msra.mxu0 0.0
        %1247 = vmatprep.subr.mxu0 0.0
        %1248 = vmatpush2.msra.mxu0 0.0
        %1249 = vmatprep.subr.mxu0 0.0
        %1250 = vmatpush2.msra.mxu0 0.0
        %1251 = vmatprep.subr.mxu0 0.0
        %1252 = vmatpush2.msra.mxu0 0.0
        %1253 = vmatprep.subr.mxu0 0.0
        %1254 = vmatpush2.msra.mxu0 0.0
        %1255 = vmatprep.subr.mxu0 0.0
        %1256 = vmatpush2.msra.mxu0 0.0
        %1257 = vmatprep.mubr.f32.mxu0 0.0
        %1258 = vmatmul.mubr.f32.gmra.mxu0 %v1185
        %v1259 = vpop.f32.mrf.mxu0
        %v1260 = vadd.f32 0.0, %v1259
        %v1261 = vpop.f32.mrf.mxu0
        %1262 = vmatprep.mubr.f32.mxu0 0.0
        %1263 = vmatmul.mubr.f32.gmra.mxu0 %v1188
        %v1264 = vpop.f32.mrf.mxu0
        %v1265 = vadd.f32 0.0, %v1264
        %v1266 = vpop.f32.mrf.mxu0
        %1267 = vdwg.mxu0
        %v1268 = vadd.f32 %v859, %v1260
        %v1269 = vadd.f32 %v864, %v1265
        %v1271 = vsel %vm704, %v1178, 0
        %1273 = vmatprep.subr.mxu0 0.0
        %1274 = vmatpush1.msra.mxu0 0.0
        %1275 = vmatprep.subr.mxu0 0.0
        %1276 = vmatpush1.msra.mxu0 0.0
        %1277 = vmatprep.subr.mxu0 0.0
        %1278 = vmatpush1.msra.mxu0 0.0
        %1279 = vmatprep.subr.mxu0 0.0
        %1280 = vmatpush1.msra.mxu0 0.0
        %1281 = vmatprep.subr.mxu0 0.0
        %1282 = vmatpush1.msra.mxu0 0.0
        %1283 = vmatprep.subr.mxu0 0.0
        %1284 = vmatpush1.msra.mxu0 0.0
        %1285 = vmatprep.subr.mxu0 0.0
        %1286 = vmatpush1.msra.mxu0 0.0
        %1287 = vmatprep.subr.mxu0 0.0
        %1288 = vmatpush1.msra.mxu0 0.0
        %1289 = vmatprep.subr.mxu0 0.0
        %1290 = vmatpush1.msra.mxu0 0.0
        %1291 = vmatprep.subr.mxu0 0.0
        %1292 = vmatpush1.msra.mxu0 0.0
        %1293 = vmatprep.subr.mxu0 0.0
        %1294 = vmatpush1.msra.mxu0 0.0
        %1295 = vmatprep.subr.mxu0 0.0
        %1296 = vmatpush1.msra.mxu0 0.0
        %1297 = vmatprep.subr.mxu0 0.0
        %1298 = vmatpush1.msra.mxu0 0.0
        %1299 = vmatprep.subr.mxu0 0.0
        %1300 = vmatpush1.msra.mxu0 0.0
        %1301 = vmatprep.subr.mxu0 0.0
        %1302 = vmatpush1.msra.mxu0 0.0
        %1303 = vmatprep.subr.mxu0 0.0
        %1304 = vmatpush1.msra.mxu0 %v1271
        %1305 = vmatprep.subr.mxu0 0.0
        %1306 = vmatpush2.msra.mxu0 0.0
        %1307 = vmatprep.subr.mxu0 0.0
        %1308 = vmatpush2.msra.mxu0 0.0
        %1309 = vmatprep.subr.mxu0 0.0
        %1310 = vmatpush2.msra.mxu0 0.0
        %1311 = vmatprep.subr.mxu0 0.0
        %1312 = vmatpush2.msra.mxu0 0.0
        %1313 = vmatprep.subr.mxu0 0.0
        %1314 = vmatpush2.msra.mxu0 0.0
        %1315 = vmatprep.subr.mxu0 0.0
        %1316 = vmatpush2.msra.mxu0 0.0
        %1317 = vmatprep.subr.mxu0 0.0
        %1318 = vmatpush2.msra.mxu0 0.0
        %1319 = vmatprep.subr.mxu0 0.0
        %1320 = vmatpush2.msra.mxu0 0.0
        %1321 = vmatprep.subr.mxu0 0.0
        %1322 = vmatpush2.msra.mxu0 0.0
        %1323 = vmatprep.subr.mxu0 0.0
        %1324 = vmatpush2.msra.mxu0 0.0
        %1325 = vmatprep.subr.mxu0 0.0
        %1326 = vmatpush2.msra.mxu0 0.0
        %1327 = vmatprep.subr.mxu0 0.0
        %1328 = vmatpush2.msra.mxu0 0.0
        %1329 = vmatprep.subr.mxu0 0.0
        %1330 = vmatpush2.msra.mxu0 0.0
        %1331 = vmatprep.subr.mxu0 0.0
        %1332 = vmatpush2.msra.mxu0 0.0
        %1333 = vmatprep.subr.mxu0 0.0
        %1334 = vmatpush2.msra.mxu0 0.0
        %1335 = vmatprep.subr.mxu0 0.0
        %1336 = vmatpush2.msra.mxu0 0.0
        %1337 = vmatprep.mubr.f32.mxu0 0.0
        %1338 = vmatmul.mubr.f32.gmra.mxu0 %v1185
        %v1339 = vpop.f32.mrf.mxu0
        %v1340 = vadd.f32 0.0, %v1339
        %v1341 = vpop.f32.mrf.mxu0
        %1342 = vmatprep.mubr.f32.mxu0 0.0
        %1343 = vmatmul.mubr.f32.gmra.mxu0 %v1188
        %v1344 = vpop.f32.mrf.mxu0
        %v1345 = vadd.f32 0.0, %v1344
        %v1346 = vpop.f32.mrf.mxu0
        %1347 = vdwg.mxu0
        %v1348 = vadd.f32 %v1015, %v1340
        %v1349 = vadd.f32 %v1020, %v1345
        %v1350 = vld [vmem:[%s3] sm:$0xff]
        %v1351 = vld [vmem:[%s3 + $0x8] sm:$0xff]
        %v1352 = vsub.f32 %v1268, %v1349
        %1354 = vset.pattern.permute.xlu0 0
        %1355 = vperm.xlu0 %1354, %v1350
        %v1356 = vpop.permute.xlu0 %1355
        %v1358 = vadd.f32 %v1352, %v1356
        %v1359 = vadd.f32 %v1348, %v1269
        %1361 = vset.pattern.permute.xlu0 0
        %1362 = vperm.xlu0 %1361, %v1351
        %v1363 = vpop.permute.xlu0 %1362
        %v1365 = vadd.f32 %v1359, %v1363
        %vm1366 = vcmask 130048
        %1367 = vst.msk [vmem:[%s255] sm:$0xff] %vm1366, %v1358
        %1368 = vst.msk [vmem:[%s255 + $0x8] sm:$0xff] %vm1366, %v1365
        %s1369 = sand.u32 %s126, 1
        %s1370 = scalar_lea.sflag [#allocation4], %s1369
        %s1371 = sand.u32 %s126, 1
        %s1372 = smul.addr %s1371, 16
        %s1373 = scalar_lea.vmem [#allocation7], %s1372
        // Predicated region
        $region45: #{tpu_custom_call.1} parent=35 // pred_check
          %p1374 = pneg %p136
        $region46: #{tpu_custom_call.1} parent=35 // pred_check_branch
          %1376 = sbr.rel (%p1374) target = $region48
        $region47: #{tpu_custom_call.1} parent=35 // pred_region
          %s1378 = ssub.s32 256, 256
          %1379 = vsyncadd %s1370, %s1378
          %s1380 = smul.addr %s24, 2
          %s1381 = smul.addr %s1380, 128
          %s1382 = scalar_lea.hbm %s4, %s1381
          %s1383 = sshll.u32 %s1373, 4
          %s1384 = int_to_ptr.vmem [resolvable:$true] %s1383
          %1389 = dma.vmem_to_hbm [thread:$0]  %s1384, 256, %s1382, %s1370, 128, 128, 8
        $region48: #{tpu_custom_call.1} parent=35 // pred_fallthru
          _
      $region36: #{tpu_custom_call.1} parent=5 // pred_fallthru
        _
      %p1390 = scmp.le.s32.totalorder 2, %s19
      // Predicated region
      $region49: #{tpu_custom_call.1} parent=5 // pred_check
        %p1391 = pneg %p1390
      $region50: #{tpu_custom_call.1} parent=5 // pred_check_branch
        %1393 = sbr.rel (%p1391) target = $region52
      $region51: #{tpu_custom_call.1} parent=5 // pred_region
        %s1394 = ssub.s32 %s19, 2
        // Predicated region
        $region53: #{tpu_custom_call.1} parent=51 // pred_check
          %p1395 = pneg %p142
        $region54: #{tpu_custom_call.1} parent=51 // pred_check_branch
          %1397 = sbr.rel (%p1395) target = $region56
        $region55: #{tpu_custom_call.1} parent=51 // pred_region
          %s1398 = sand.u32 %s127, 1
          %s1399 = scalar_lea.sflag [#allocation4], %s1398
          %s1400 = sand.u32 %s127, 1
          %s1401 = smul.addr %s1400, 16
          %s1402 = scalar_lea.vmem [#allocation7], %s1401
          %1403 = dma.done %s1399, 256
        $region56: #{tpu_custom_call.1} parent=51 // pred_fallthru
          _
      $region52: #{tpu_custom_call.1} parent=5 // pred_fallthru
        _
    $region6: #{tpu_custom_call.1} parent=1 // loop_footer
      %s23 = sadd.s32 1, %s19
    $region7: #{tpu_custom_call.1} parent=1 // loop_footer_branch
      %18 = sbr.rel target = $region3
    $region8: #{tpu_custom_call.1} parent=1 // loop_exit
      _
    %1404 = vsyncpa [#allocation3], 1
    %s1405 = scalar_lea.sflag [#allocation3], 1
    %1406 = vsyncpa %s1405, 1
    %1407 = vsyncpa [#allocation6], 1
    %s1408 = scalar_lea.sflag [#allocation6], 1
    %1409 = vsyncpa %s1408, 1
    %1410 = vsyncpa [#allocation4], 1
    %s1411 = scalar_lea.sflag [#allocation4], 1
    %1412 = vsyncpa %s1411, 1

</llo_original>
